<compile_context>
chip_gen: v5e
topology: v5e:2x2
jax: 0.10.0
libtpu: 0.0.40
codegen_flags: <defaults>
</compile_context>

<pallas_src>
import functools

import numpy as np
import jax
import jax.numpy as jnp
from jax import lax
from jax.experimental import pallas as pl
from jax.experimental.pallas import tpu as pltpu

# -------- static "opt" configuration --------
LAMBDA_SOFTMAX = 9.0
LAMBDA_LSE = 6.0
MARGIN = 0.2
MAX_VIOLATION = True
EPS = 1e-8


def _div(num, den, approx):
    """num / den, routed to the EUP (approx reciprocal) on the fast path."""
    if approx:
        return num * pl.reciprocal(den, approx=True)
    return num / den


def _exp(x, exp_dtype):
    """exp(), optionally on the bf16 EUP path (v6e/v7x); f32 result either way."""
    if exp_dtype == jnp.bfloat16:
        return jnp.exp(x.astype(jnp.bfloat16)).astype(jnp.float32)
    return jnp.exp(x)


def _scores_kernel(im_ref, gram_ref, grp_ref, cap_ref, mask_ref, scores_ref, *,
                   n_region, mxu_dtype, exp_dtype, approx):
    im = im_ref[...]        # (Bi, R_pad, D)      resident, precast mxu dtype
    gram = gram_ref[...]    # (Bi, R_pad, R_pad)  resident, G = im @ im^T
    grp = grp_ref[...]      # (CT, C)             resident, 0/1 word->caption map
    cap = cap_ref[...]      # (CT, D)             per-chunk caption words
    msk = mask_ref[...]     # (1, CT)             1.0 = valid word

    Bi, R_pad, _ = im.shape
    CT, C = grp.shape

    # (1) raw attention logits for the whole caption chunk in one MXU matmul:
    #     attn_raw[i, r, ct] = <im[i, r, :], cap[ct, :]>  (f32 accumulation).
    #     Kept around for w12 (Gram trick), so weightedContext never exists.
    attn_raw = lax.dot_general(
        im, cap, dimension_numbers=(((2,), (1,)), ((), ())),
        preferred_element_type=jnp.float32)                        # (Bi, R_pad, CT)

    # (2) clipped_l2norm over each caption's words.  Word-mask folded into the
    #     LeakyReLU pass; per-caption sums via exact 0/1 group matmuls (MXU).
    a = attn_raw * msk[None]
    a = jnp.maximum(a, 0.1 * a)                                    # LeakyReLU(0.1)
    ss = lax.dot_general(a * a, grp,
                         dimension_numbers=(((2,), (0,)), ((), ())),
                         preferred_element_type=jnp.float32)       # (Bi, R_pad, C)
    ssb = lax.dot_general(ss, grp,
                          dimension_numbers=(((2,), (1,)), ((), ())),
                          preferred_element_type=jnp.float32)      # (Bi, R_pad, CT)
    attn_n = _div(a, jnp.sqrt(ssb) + EPS, approx)

    # (3) softmax over regions (axis=1).  attn_n is per-caption l2-normalized so
    #     |logits| <= LAMBDA_SOFTMAX = 9 -> exp is safe without max-subtraction.
    e = _exp(attn_n * LAMBDA_SOFTMAX, exp_dtype)                   # (Bi, R_pad, CT)
    if n_region != R_pad:
        # zero-padded regions would otherwise contribute exp(0) = 1
        r_valid = (lax.broadcasted_iota(jnp.int32, (1, R_pad, 1), 1)
                   < n_region).astype(jnp.float32)
        e = e * r_valid
    p = _div(e, jnp.sum(e, axis=1, keepdims=True), approx)         # (Bi, R_pad, CT)

    # (4)+(5) cosine(cap, weightedContext) without materializing weightedContext:
    #   w12[i,ct]  = sum_r p[i,r,ct] * attn_raw[i,r,ct]
    #   w2^2[i,ct] = sum_r p[i,r,ct] * (G[i] @ p[i])[r,ct]
    w12 = jnp.sum(p * attn_raw, axis=1)                            # (Bi, CT)
    gp = lax.dot_general(gram, p.astype(mxu_dtype),
                         dimension_numbers=(((2,), (1,)), ((0,), (0,))),
                         preferred_element_type=jnp.float32)       # (Bi, R_pad, CT)
    w2sq = jnp.maximum(jnp.sum(p * gp, axis=1), 0.0)               # (Bi, CT)
    cap32 = cap.astype(jnp.float32)
    w1 = jnp.sqrt(jnp.sum(cap32 * cap32, axis=-1))[None, :]        # (1, CT)
    sim = _div(w12, jnp.maximum(w1 * jnp.sqrt(w2sq), EPS), approx)  # (Bi, CT)

    # (6) masked LogSumExp over valid words of each caption.  |sim| <= 1 and
    #     LAMBDA_LSE = 6 -> exp needs no max-subtraction.  Emitted lane-dense
    #     as a (C, Bi) slab (Bi along lanes).
    z = _exp(sim * LAMBDA_LSE, exp_dtype) * msk                    # (Bi, CT)
    zc = lax.dot_general(grp, z,
                         dimension_numbers=(((0,), (1,)), ((), ())),
                         preferred_element_type=jnp.float32)       # (C, Bi)
    zc = jnp.maximum(zc, 1e-30)        # guard s_l == 0 -> avoid log(0) = -inf
    scores_ref[...] = jnp.log(zc) * (1.0 / LAMBDA_LSE)


def _loss_kernel(scores_ref, loss_ref):
    """(B, B) contrastive hinge loss epilogue -- negligible work, single program."""
    scores = scores_ref[...]
    n = scores.shape[0]
    row_i = lax.broadcasted_iota(jnp.int32, (n, n), 0)
    col_i = lax.broadcasted_iota(jnp.int32, (n, n), 1)
    eye = row_i == col_i

    diag_col = jnp.sum(jnp.where(eye, scores, 0.0), axis=1, keepdims=True)  # (n,1)
    diag_row = jnp.sum(jnp.where(eye, scores, 0.0), axis=0, keepdims=True)  # (1,n)

    cost_s = jnp.maximum(MARGIN + scores - diag_col, 0.0)
    cost_im = jnp.maximum(MARGIN + scores - diag_row, 0.0)
    cost_s = jnp.where(eye, 0.0, cost_s)
    cost_im = jnp.where(eye, 0.0, cost_im)

    # TODO(synk): if any s_l == 0 columns exist, mask them here (sentinel score).
    if MAX_VIOLATION:
        ls = jnp.max(cost_s, axis=1, keepdims=True)             # (n, 1)
        li = jnp.max(cost_im, axis=0, keepdims=True)            # (1, n)
        loss = (jnp.sum(ls, axis=0, keepdims=True)
                + jnp.sum(li, axis=1, keepdims=True))           # (1, 1)
    else:
        loss = jnp.sum(cost_s + cost_im, axis=0, keepdims=True)
        loss = jnp.sum(loss, axis=1, keepdims=True)
    loss_ref[...] = loss


# -------- chip introspection helpers (robust fallbacks; never required) --------
def _device_kind():
    try:
        return jax.devices()[0].device_kind.lower()
    except Exception:
        return ""


def _vmem_capacity_bytes():
    try:
        return int(pltpu.get_tpu_info().vmem_capacity_bytes)
    except Exception:
        return 128 * 1024 * 1024


def _vmem_limit_bytes(cap):
    if cap <= 64 * 1024 * 1024:                                   # v7x: 64 MiB / TC
        return max(cap - 12 * 1024 * 1024, 32 * 1024 * 1024)      # leave headroom
    return min(cap - 28 * 1024 * 1024, 100 * 1024 * 1024)         # v5e / v6e


def _pick_chunk(n_caption, n_word, n_image, r_pad, d, mxu_bytes, budget_bytes,
                two_cores):
    """Largest caption-chunk whose per-step VMEM live set fits the budget."""
    divisors = [c for c in range(1, n_caption + 1) if n_caption % c == 0]

    def fits(c):
        ct = c * n_word
        resident = (n_image * r_pad * d * mxu_bytes         # image (single-buf)
                    + n_image * r_pad * r_pad * mxu_bytes   # Gram
                    + ct * c * 4)                           # group matrix
        pipelined = 2 * (ct * d * mxu_bytes + ct * 4 + c * n_image * 4)
        live = 4 * n_image * r_pad * ct * 4                 # attn_raw / p / Gp / slack
        return resident + pipelined + live <= budget_bytes

    fitting = [c for c in divisors if fits(c)] or [1]
    best = max(fitting)
    if two_cores:
        # keep >= 2 (ideally an even number of) grid steps so both v7x TCs work
        even = [c for c in fitting if n_caption // c >= 2 and (n_caption // c) % 2 == 0]
        some = [c for c in fitting if n_caption // c >= 2]
        if even:
            best = max(even)
        elif some:
            best = max(some)
    return best


def contrastive_loss_pallas(im, s, s_l, *, chunk=None, fast=True):
    """im: (B, R, D), s: (B, T, D), s_l: (B,) int -> (loss, scores)."""
    im = im.astype(jnp.float32)
    s = s.astype(jnp.float32)
    Bi, R, D = im.shape
    Bc, T, _ = s.shape
    assert Bi == Bc, "contrastive loss expects a square score matrix"

    R_pad = ((R + 7) // 8) * 8                     # sublane-align the region axis
    mxu_dtype = jnp.bfloat16 if fast else jnp.float32
    mxu_bytes = 2 if fast else 4

    kind = _device_kind()
    vmem_limit = _vmem_limit_bytes(_vmem_capacity_bytes())
    exp_dtype = (jnp.bfloat16
                 if fast and any(t in kind for t in ("v6", "7x", "tpu7"))
                 else jnp.float32)

    if chunk is None:
        chunk = _pick_chunk(Bc, T, Bi, R_pad, D, mxu_bytes,
                            int(vmem_limit * 0.9),
                            two_cores=("7x" in kind or "tpu7" in kind))
    # TODO(synk): pad the caption batch when Bc has no suitable divisor.
    assert Bc % chunk == 0, "caption count must be divisible by chunk"
    n_chunks = Bc // chunk
    CT = chunk * T

    # ---- wrapper-side prep (once per call, not per grid step) ----
    im_p = im if R_pad == R else jnp.pad(im, ((0, 0), (0, R_pad - R), (0, 0)))
    gram = lax.dot_general(
        im_p, im_p, dimension_numbers=(((2,), (2,)), ((0,), (0,))),
        precision=(lax.Precision.DEFAULT if fast else lax.Precision.HIGHEST),
        preferred_element_type=jnp.float32).astype(mxu_dtype)     # (Bi, R_pad, R_pad)
    im_in = im_p.astype(mxu_dtype)                                # precast (bf16 fast)
    cap_chunks = s.reshape(n_chunks, CT, D).astype(mxu_dtype)     # (n_chunks, CT, D)
    word_mask = (jnp.arange(T)[None, :] < s_l[:, None]).astype(jnp.float32)
    mask_chunks = word_mask.reshape(n_chunks, 1, CT)              # (n_chunks, 1, CT)
    grp = jnp.repeat(jnp.eye(chunk, dtype=jnp.float32), T, axis=0)  # (CT, chunk)

    kernel = functools.partial(_scores_kernel, n_region=R, mxu_dtype=mxu_dtype,
                               exp_dtype=exp_dtype, approx=fast)

    def run(single_buffer):
        def res_spec(shape):
            imap = lambda j, _n=len(shape): (0,) * _n
            if single_buffer:
                return pl.BlockSpec(shape, imap, pipeline_mode=pl.Buffered(1))
            return pl.BlockSpec(shape, imap)

        call = pl.pallas_call(
            kernel,
            out_shape=jax.ShapeDtypeStruct((n_chunks, chunk, Bi), jnp.float32),
            grid_spec=pltpu.PrefetchScalarGridSpec(
                num_scalar_prefetch=0,
                grid=(n_chunks,),
                in_specs=[
                    res_spec((Bi, R_pad, D)),            # resident image
                    res_spec((Bi, R_pad, R_pad)),        # resident Gram matrix
                    res_spec((CT, chunk)),               # resident word->caption map
                    pl.BlockSpec((None, CT, D), lambda j: (j, 0, 0)),   # captions
                    pl.BlockSpec((None, 1, CT), lambda j: (j, 0, 0)),   # word mask
                ],
                out_specs=pl.BlockSpec((None, chunk, Bi), lambda j: (j, 0, 0)),
            ),
            compiler_params=pltpu.CompilerParams(
                dimension_semantics=("parallel",),       # v7x: shard chunks over TCs
                vmem_limit_bytes=vmem_limit,
            ),
        )
        return jax.block_until_ready(call(im_in, gram, grp, cap_chunks, mask_chunks))

    try:
        scores3 = run(single_buffer=True)
    except Exception:
        # pl.Buffered(1) single-buffering unsupported on this jax version:
        # fall back to default double-buffered resident blocks.
        scores3 = run(single_buffer=False)

    # (n_chunks, chunk, Bi) -> (Bi, Bc): cheap wrapper-side layout plumbing
    scores = jnp.transpose(scores3.reshape(Bc, Bi))

    loss = pl.pallas_call(
        _loss_kernel,
        out_shape=jax.ShapeDtypeStruct((1, 1), jnp.float32),
        in_specs=[pl.BlockSpec(memory_space=pltpu.MemorySpace.VMEM)],
        out_specs=pl.BlockSpec(memory_space=pltpu.MemorySpace.VMEM),
    )(scores)
    return loss[0, 0], scores


def reference_loss(im, s, s_l):
    """Pure-numpy reference mirroring the PyTorch forward (t2i / clipped_l2norm /
    LogSumExp), using true per-caption truncation."""
    im = np.asarray(im, np.float32)
    s = np.asarray(s, np.float32)
    s_l = [int(v) for v in np.asarray(s_l)]
    n_image, _, d = im.shape
    sims = []
    for i, nw in enumerate(s_l):
        cap_i = s[i, :nw, :]                                     # (nw, D)
        attn = np.einsum('brd,td->brt', im, cap_i)               # (B, R, nw)
        attn = np.where(attn > 0, attn, 0.1 * attn)
        attn = attn / (np.sqrt((attn ** 2).sum(axis=2, keepdims=True)) + EPS)
        attn = np.transpose(attn, (0, 2, 1)) * LAMBDA_SOFTMAX    # (B, nw, R)
        attn = attn - attn.max(axis=2, keepdims=True)
        e = np.exp(attn)
        p = e / e.sum(axis=2, keepdims=True)
        wctx = np.einsum('btr,brd->btd', p, im)                  # (B, nw, D)
        cap_e = np.broadcast_to(cap_i[None], (n_image, nw, d))
        w12 = (cap_e * wctx).sum(axis=2)
        w1 = np.sqrt((cap_e ** 2).sum(axis=2))
        w2 = np.sqrt((wctx ** 2).sum(axis=2))
        sim = w12 / np.maximum(w1 * w2, EPS)
        row = np.log(np.exp(sim * LAMBDA_LSE).sum(axis=1, keepdims=True)) / LAMBDA_LSE
        sims.append(row)
    scores = np.concatenate(sims, axis=1)                        # (B, B)
    diag = np.diag(scores).reshape(-1, 1)
    cost_s = np.clip(MARGIN + scores - diag, 0, None)
    cost_im = np.clip(MARGIN + scores - diag.T, 0, None)
    np.fill_diagonal(cost_s, 0.0)
    np.fill_diagonal(cost_im, 0.0)
    if MAX_VIOLATION:
        return float(cost_s.max(axis=1).sum() + cost_im.max(axis=0).sum()), scores
    return float(cost_s.sum() + cost_im.sum()), scores


if __name__ == "__main__":
    B, R, T, D = 4, 8, 8, 32
    key = jax.random.PRNGKey(0)
    k1, k2 = jax.random.split(key)
    im = jax.random.normal(k1, (B, R, D), dtype=jnp.float32)
    s = jax.random.normal(k2, (B, T, D), dtype=jnp.float32)
    s_l = jnp.array([8, 5, 7, 3], dtype=jnp.int32)   # variable caption lengths

    ref_loss, ref_scores = reference_loss(im, s, s_l)

    # Precise path (f32 MXU operands, exact divides, f32 exp): validates the
    # Gram-trick math against the PyTorch-equivalent reference; chunk=2
    # exercises a 2-step grid.
    loss, scores = contrastive_loss_pallas(im, s, s_l, chunk=2, fast=False)
    loss = jax.block_until_ready(loss)
    scores = jax.block_until_ready(scores)
    np.testing.assert_allclose(np.asarray(scores), ref_scores, rtol=2e-4, atol=2e-5)
    np.testing.assert_allclose(float(loss), ref_loss, rtol=2e-4, atol=2e-5)

    # Fast path (default: bf16 MXU operands, approx EUP reciprocals, VMEM-budget
    # chunk, bf16 exp where the chip supports it) -- loose-tolerance sanity check.
    loss_f, scores_f = contrastive_loss_pallas(im, s, s_l, fast=True)
    loss_f = jax.block_until_ready(loss_f)
    scores_f = jax.block_until_ready(scores_f)
    np.testing.assert_allclose(np.asarray(scores_f), ref_scores, rtol=0.1, atol=0.05)
    assert np.isfinite(float(loss_f))

    # Non-sublane-aligned region count (R=6 -> padded to 8) exercises the
    # R-padding + region-mask path.
    R2 = 6
    im2 = jax.random.normal(jax.random.PRNGKey(1), (B, R2, D), dtype=jnp.float32)
    ref_loss2, ref_scores2 = reference_loss(im2, s, s_l)
    loss2, scores2 = contrastive_loss_pallas(im2, s, s_l, chunk=2, fast=False)
    loss2 = jax.block_until_ready(loss2)
    scores2 = jax.block_until_ready(scores2)
    np.testing.assert_allclose(np.asarray(scores2), ref_scores2, rtol=2e-4, atol=2e-5)
    np.testing.assert_allclose(float(loss2), ref_loss2, rtol=2e-4, atol=2e-5)

    print("KERNEL_OK")
</pallas_src>

<mosaic_0001>
module attributes {stable_mosaic.version = 11 : i64} {
  func.func @_scores_kernel(%arg0: i32, %arg1: memref<4x8x32xf32, #tpu.memory_space<vmem>>, %arg2: memref<4x8x8xf32, #tpu.memory_space<vmem>>, %arg3: memref<16x2xf32, #tpu.memory_space<vmem>>, %arg4: memref<1x16x32xf32, #tpu.memory_space<vmem>>, %arg5: memref<1x1x16xf32, #tpu.memory_space<vmem>>, %arg6: memref<1x2x4xf32, #tpu.memory_space<vmem>>) attributes {dimension_semantics = [#tpu.dimension_semantics<parallel>], iteration_bounds = array<i64: 2>, scalar_prefetch = 0 : i64, scratch_operands = 0 : i64, tpu.core_type = #tpu.core_type<tc>, window_params = [{pipeline_mode = #tpu.pipeline_mode<synchronous>, transform_indices = @transform_0, window_bounds = array<i64: 4, 8, 32>}, {pipeline_mode = #tpu.pipeline_mode<synchronous>, transform_indices = @transform_1, window_bounds = array<i64: 4, 8, 8>}, {pipeline_mode = #tpu.pipeline_mode<synchronous>, transform_indices = @transform_2, window_bounds = array<i64: 16, 2>}, {transform_indices = @transform_3, window_bounds = array<i64: 1, 16, 32>}, {transform_indices = @transform_4, window_bounds = array<i64: 1, 1, 16>}, {transform_indices = @transform_5, window_bounds = array<i64: 1, 2, 4>}]} {
    %c0 = arith.constant 0 : index
    %c0_0 = arith.constant 0 : index
    %c0_1 = arith.constant 0 : index
    %0 = vector.load %arg1[%c0, %c0_0, %c0_1] : memref<4x8x32xf32, #tpu.memory_space<vmem>>, vector<4x8x32xf32>
    %c0_2 = arith.constant 0 : index
    %c0_3 = arith.constant 0 : index
    %c0_4 = arith.constant 0 : index
    %1 = vector.load %arg2[%c0_2, %c0_3, %c0_4] : memref<4x8x8xf32, #tpu.memory_space<vmem>>, vector<4x8x8xf32>
    %c0_5 = arith.constant 0 : index
    %c0_6 = arith.constant 0 : index
    %2 = vector.load %arg3[%c0_5, %c0_6] : memref<16x2xf32, #tpu.memory_space<vmem>>, vector<16x2xf32>
    %c0_7 = arith.constant 0 : index
    %c0_8 = arith.constant 0 : index
    %c0_9 = arith.constant 0 : index
    %3 = vector.load %arg4[%c0_7, %c0_8, %c0_9] : memref<1x16x32xf32, #tpu.memory_space<vmem>>, vector<1x16x32xf32>
    %4 = vector.shape_cast %3 : vector<1x16x32xf32> to vector<16x32xf32>
    %c0_10 = arith.constant 0 : index
    %c0_11 = arith.constant 0 : index
    %c0_12 = arith.constant 0 : index
    %5 = vector.load %arg5[%c0_10, %c0_11, %c0_12] : memref<1x1x16xf32, #tpu.memory_space<vmem>>, vector<1x1x16xf32>
    %6 = vector.shape_cast %5 : vector<1x1x16xf32> to vector<1x16xf32>
    %cst = arith.constant dense<0.000000e+00> : vector<4x8x16xf32>
    %7 = tpu.matmul %0, %4, %cst {dimension_numbers = #tpu.dot_dimension_numbers<[2], [1], [0, 1], [0], [0, 0, 0, 1, 1, 0], [], []>} : vector<4x8x32xf32>, vector<16x32xf32>, vector<4x8x16xf32> -> vector<4x8x16xf32>
    %8 = vector.shape_cast %6 : vector<1x16xf32> to vector<1x1x16xf32>
    %9 = vector.broadcast %8 : vector<1x1x16xf32> to vector<4x8x16xf32>
    %10 = arith.mulf %7, %9 : vector<4x8x16xf32>
    %cst_13 = arith.constant 1.000000e-01 : f32
    %11 = vector.broadcast %cst_13 : f32 to vector<4x8x16xf32>
    %12 = arith.mulf %11, %10 : vector<4x8x16xf32>
    %13 = arith.maximumf %10, %12 : vector<4x8x16xf32>
    %14 = arith.mulf %13, %13 : vector<4x8x16xf32>
    %cst_14 = arith.constant dense<0.000000e+00> : vector<4x8x2xf32>
    %15 = tpu.matmul %14, %2, %cst_14 {dimension_numbers = #tpu.dot_dimension_numbers<[2], [0], [0, 1], [1], [0, 0, 0, 1, 1, 1], [], []>} : vector<4x8x16xf32>, vector<16x2xf32>, vector<4x8x2xf32> -> vector<4x8x2xf32>
    %cst_15 = arith.constant dense<0.000000e+00> : vector<4x8x16xf32>
    %16 = tpu.matmul %15, %2, %cst_15 {dimension_numbers = #tpu.dot_dimension_numbers<[2], [1], [0, 1], [0], [0, 0, 0, 1, 1, 0], [], []>} : vector<4x8x2xf32>, vector<16x2xf32>, vector<4x8x16xf32> -> vector<4x8x16xf32>
    %17 = math.sqrt %16 : vector<4x8x16xf32>
    %cst_16 = arith.constant 9.99999993E-9 : f32
    %18 = vector.broadcast %cst_16 : f32 to vector<4x8x16xf32>
    %19 = arith.addf %17, %18 : vector<4x8x16xf32>
    %20 = arith.divf %13, %19 : vector<4x8x16xf32>
    %cst_17 = arith.constant 9.000000e+00 : f32
    %21 = vector.broadcast %cst_17 : f32 to vector<4x8x16xf32>
    %22 = arith.mulf %20, %21 : vector<4x8x16xf32>
    %23 = math.exp %22 : vector<4x8x16xf32>
    %cst_18 = arith.constant dense<0.000000e+00> : vector<4x16xf32>
    %24 = vector.multi_reduction <add>, %23, %cst_18 [1] : vector<4x8x16xf32> to vector<4x16xf32>
    %25 = vector.shape_cast %24 : vector<4x16xf32> to vector<4x1x16xf32>
    %26 = vector.broadcast %25 : vector<4x1x16xf32> to vector<4x8x16xf32>
    %27 = arith.divf %23, %26 : vector<4x8x16xf32>
    %28 = arith.mulf %27, %7 : vector<4x8x16xf32>
    %cst_19 = arith.constant dense<0.000000e+00> : vector<4x16xf32>
    %29 = vector.multi_reduction <add>, %28, %cst_19 [1] : vector<4x8x16xf32> to vector<4x16xf32>
    %cst_20 = arith.constant dense<0.000000e+00> : vector<4x8x16xf32>
    %30 = tpu.matmul %1, %27, %cst_20 {dimension_numbers = #tpu.dot_dimension_numbers<[2], [1], [1], [2], [0, 0, 0, 1, 1, 2], [0], [0]>} : vector<4x8x8xf32>, vector<4x8x16xf32>, vector<4x8x16xf32> -> vector<4x8x16xf32>
    %31 = arith.mulf %27, %30 : vector<4x8x16xf32>
    %cst_21 = arith.constant dense<0.000000e+00> : vector<4x16xf32>
    %32 = vector.multi_reduction <add>, %31, %cst_21 [1] : vector<4x8x16xf32> to vector<4x16xf32>
    %cst_22 = arith.constant 0.000000e+00 : f32
    %33 = vector.broadcast %cst_22 : f32 to vector<4x16xf32>
    %34 = arith.maximumf %32, %33 : vector<4x16xf32>
    %35 = arith.mulf %4, %4 : vector<16x32xf32>
    %cst_23 = arith.constant dense<0.000000e+00> : vector<16xf32>
    %36 = vector.multi_reduction <add>, %35, %cst_23 [1] : vector<16x32xf32> to vector<16xf32>
    %37 = math.sqrt %36 : vector<16xf32>
    %38 = vector.shape_cast %37 : vector<16xf32> to vector<1x16xf32>
    %39 = math.sqrt %34 : vector<4x16xf32>
    %40 = vector.broadcast %38 : vector<1x16xf32> to vector<4x16xf32>
    %41 = arith.mulf %40, %39 : vector<4x16xf32>
    %cst_24 = arith.constant 9.99999993E-9 : f32
    %42 = vector.broadcast %cst_24 : f32 to vector<4x16xf32>
    %43 = arith.maximumf %41, %42 : vector<4x16xf32>
    %44 = arith.divf %29, %43 : vector<4x16xf32>
    %cst_25 = arith.constant 6.000000e+00 : f32
    %45 = vector.broadcast %cst_25 : f32 to vector<4x16xf32>
    %46 = arith.mulf %44, %45 : vector<4x16xf32>
    %47 = math.exp %46 : vector<4x16xf32>
    %48 = vector.broadcast %6 : vector<1x16xf32> to vector<4x16xf32>
    %49 = arith.mulf %47, %48 : vector<4x16xf32>
    %cst_26 = arith.constant dense<0.000000e+00> : vector<2x4xf32>
    %50 = tpu.matmul %2, %49, %cst_26 {dimension_numbers = #tpu.dot_dimension_numbers<[0], [1], [1], [0], [0, 1, 1, 0], [], []>} : vector<16x2xf32>, vector<4x16xf32>, vector<2x4xf32> -> vector<2x4xf32>
    %cst_27 = arith.constant 1.000000e-30 : f32
    %51 = vector.broadcast %cst_27 : f32 to vector<2x4xf32>
    %52 = arith.maximumf %50, %51 : vector<2x4xf32>
    %53 = math.log %52 : vector<2x4xf32>
    %cst_28 = arith.constant 0.166666672 : f32
    %54 = vector.broadcast %cst_28 : f32 to vector<2x4xf32>
    %55 = arith.mulf %53, %54 : vector<2x4xf32>
    %c0_29 = arith.constant 0 : index
    %c0_30 = arith.constant 0 : index
    %c0_31 = arith.constant 0 : index
    %56 = vector.load %arg6[%c0_29, %c0_30, %c0_31] : memref<1x2x4xf32, #tpu.memory_space<vmem>>, vector<1x2x4xf32>
    %57 = vector.shape_cast %56 : vector<1x2x4xf32> to vector<2x4xf32>
    %58 = vector.shape_cast %55 : vector<2x4xf32> to vector<1x2x4xf32>
    tpu.vector_store %arg6[%c0_29, %c0_30, %c0_31], %58 {strides = array<i32>} : memref<1x2x4xf32, #tpu.memory_space<vmem>>, vector<1x2x4xf32>,
    return
  }
  func.func @transform_0(%arg0: i32) -> (i32, i32, i32) {
    %c0_i32 = arith.constant 0 : i32
    %c0_i32_0 = arith.constant 0 : i32
    %c0_i32_1 = arith.constant 0 : i32
    %c0_i32_2 = arith.constant 0 : i32
    return %c0_i32, %c0_i32_0, %c0_i32_1 : i32, i32, i32
  }
  func.func @transform_1(%arg0: i32) -> (i32, i32, i32) {
    %c0_i32 = arith.constant 0 : i32
    %c0_i32_0 = arith.constant 0 : i32
    %c0_i32_1 = arith.constant 0 : i32
    %c0_i32_2 = arith.constant 0 : i32
    return %c0_i32, %c0_i32_0, %c0_i32_1 : i32, i32, i32
  }
  func.func @transform_2(%arg0: i32) -> (i32, i32) {
    %c0_i32 = arith.constant 0 : i32
    %c0_i32_0 = arith.constant 0 : i32
    %c0_i32_1 = arith.constant 0 : i32
    return %c0_i32, %c0_i32_0 : i32, i32
  }
  func.func @transform_3(%arg0: i32) -> (i32, i32, i32) {
    %c0_i32 = arith.constant 0 : i32
    %c0_i32_0 = arith.constant 0 : i32
    %c0_i32_1 = arith.constant 0 : i32
    return %arg0, %c0_i32, %c0_i32_0 : i32, i32, i32
  }
  func.func @transform_4(%arg0: i32) -> (i32, i32, i32) {
    %c0_i32 = arith.constant 0 : i32
    %c0_i32_0 = arith.constant 0 : i32
    %c0_i32_1 = arith.constant 0 : i32
    return %arg0, %c0_i32, %c0_i32_0 : i32, i32, i32
  }
  func.func @transform_5(%arg0: i32) -> (i32, i32, i32) {
    %c0_i32 = arith.constant 0 : i32
    %c0_i32_0 = arith.constant 0 : i32
    %c0_i32_1 = arith.constant 0 : i32
    return %arg0, %c0_i32, %c0_i32_0 : i32, i32, i32
  }
}

module attributes {stable_mosaic.version = 11 : i64} {
  func.func @_scores_kernel(%arg0: i32, %arg1: memref<4x8x32xf32, #tpu.memory_space<vmem>>, %arg2: memref<4x8x8xf32, #tpu.memory_space<vmem>>, %arg3: memref<16x2xf32, #tpu.memory_space<vmem>>, %arg4: memref<1x16x32xf32, #tpu.memory_space<vmem>>, %arg5: memref<1x1x16xf32, #tpu.memory_space<vmem>>, %arg6: memref<1x2x4xf32, #tpu.memory_space<vmem>>) attributes {dimension_semantics = [#tpu.dimension_semantics<parallel>], iteration_bounds = array<i64: 2>, scalar_prefetch = 0 : i64, scratch_operands = 0 : i64, tpu.core_type = #tpu.core_type<tc>, window_params = [{pipeline_mode = #tpu.pipeline_mode<synchronous>, transform_indices = @transform_0, window_bounds = array<i64: 4, 8, 32>}, {pipeline_mode = #tpu.pipeline_mode<synchronous>, transform_indices = @transform_1, window_bounds = array<i64: 4, 8, 8>}, {pipeline_mode = #tpu.pipeline_mode<synchronous>, transform_indices = @transform_2, window_bounds = array<i64: 16, 2>}, {transform_indices = @transform_3, window_bounds = array<i64: 1, 16, 32>}, {transform_indices = @transform_4, window_bounds = array<i64: 1, 1, 16>}, {transform_indices = @transform_5, window_bounds = array<i64: 1, 2, 4>}]} {
    %c0 = arith.constant 0 : index
    %c0_0 = arith.constant 0 : index
    %c0_1 = arith.constant 0 : index
    %0 = vector.load %arg1[%c0, %c0_0, %c0_1] : memref<4x8x32xf32, #tpu.memory_space<vmem>>, vector<4x8x32xf32>
    %c0_2 = arith.constant 0 : index
    %c0_3 = arith.constant 0 : index
    %c0_4 = arith.constant 0 : index
    %1 = vector.load %arg2[%c0_2, %c0_3, %c0_4] : memref<4x8x8xf32, #tpu.memory_space<vmem>>, vector<4x8x8xf32>
    %c0_5 = arith.constant 0 : index
    %c0_6 = arith.constant 0 : index
    %2 = vector.load %arg3[%c0_5, %c0_6] : memref<16x2xf32, #tpu.memory_space<vmem>>, vector<16x2xf32>
    %c0_7 = arith.constant 0 : index
    %c0_8 = arith.constant 0 : index
    %c0_9 = arith.constant 0 : index
    %3 = vector.load %arg4[%c0_7, %c0_8, %c0_9] : memref<1x16x32xf32, #tpu.memory_space<vmem>>, vector<1x16x32xf32>
    %4 = vector.shape_cast %3 : vector<1x16x32xf32> to vector<16x32xf32>
    %c0_10 = arith.constant 0 : index
    %c0_11 = arith.constant 0 : index
    %c0_12 = arith.constant 0 : index
    %5 = vector.load %arg5[%c0_10, %c0_11, %c0_12] : memref<1x1x16xf32, #tpu.memory_space<vmem>>, vector<1x1x16xf32>
    %6 = vector.shape_cast %5 : vector<1x1x16xf32> to vector<1x16xf32>
    %cst = arith.constant dense<0.000000e+00> : vector<4x8x16xf32>
    %7 = tpu.matmul %0, %4, %cst {dimension_numbers = #tpu.dot_dimension_numbers<[2], [1], [0, 1], [0], [0, 0, 0, 1, 1, 0], [], []>} : vector<4x8x32xf32>, vector<16x32xf32>, vector<4x8x16xf32> -> vector<4x8x16xf32>
    %8 = vector.shape_cast %6 : vector<1x16xf32> to vector<1x1x16xf32>
    %9 = vector.broadcast %8 : vector<1x1x16xf32> to vector<4x8x16xf32>
    %10 = arith.mulf %7, %9 : vector<4x8x16xf32>
    %cst_13 = arith.constant 1.000000e-01 : f32
    %11 = vector.broadcast %cst_13 : f32 to vector<4x8x16xf32>
    %12 = arith.mulf %11, %10 : vector<4x8x16xf32>
    %13 = arith.maximumf %10, %12 : vector<4x8x16xf32>
    %14 = arith.mulf %13, %13 : vector<4x8x16xf32>
    %cst_14 = arith.constant dense<0.000000e+00> : vector<4x8x2xf32>
    %15 = tpu.matmul %14, %2, %cst_14 {dimension_numbers = #tpu.dot_dimension_numbers<[2], [0], [0, 1], [1], [0, 0, 0, 1, 1, 1], [], []>} : vector<4x8x16xf32>, vector<16x2xf32>, vector<4x8x2xf32> -> vector<4x8x2xf32>
    %cst_15 = arith.constant dense<0.000000e+00> : vector<4x8x16xf32>
    %16 = tpu.matmul %15, %2, %cst_15 {dimension_numbers = #tpu.dot_dimension_numbers<[2], [1], [0, 1], [0], [0, 0, 0, 1, 1, 0], [], []>} : vector<4x8x2xf32>, vector<16x2xf32>, vector<4x8x16xf32> -> vector<4x8x16xf32>
    %17 = math.sqrt %16 : vector<4x8x16xf32>
    %cst_16 = arith.constant 9.99999993E-9 : f32
    %18 = vector.broadcast %cst_16 : f32 to vector<4x8x16xf32>
    %19 = arith.addf %17, %18 : vector<4x8x16xf32>
    %20 = arith.divf %13, %19 : vector<4x8x16xf32>
    %cst_17 = arith.constant 9.000000e+00 : f32
    %21 = vector.broadcast %cst_17 : f32 to vector<4x8x16xf32>
    %22 = arith.mulf %20, %21 : vector<4x8x16xf32>
    %23 = math.exp %22 : vector<4x8x16xf32>
    %cst_18 = arith.constant dense<0.000000e+00> : vector<4x16xf32>
    %24 = vector.multi_reduction <add>, %23, %cst_18 [1] : vector<4x8x16xf32> to vector<4x16xf32>
    %25 = vector.shape_cast %24 : vector<4x16xf32> to vector<4x1x16xf32>
    %26 = vector.broadcast %25 : vector<4x1x16xf32> to vector<4x8x16xf32>
    %27 = arith.divf %23, %26 : vector<4x8x16xf32>
    %28 = arith.mulf %27, %7 : vector<4x8x16xf32>
    %cst_19 = arith.constant dense<0.000000e+00> : vector<4x16xf32>
    %29 = vector.multi_reduction <add>, %28, %cst_19 [1] : vector<4x8x16xf32> to vector<4x16xf32>
    %cst_20 = arith.constant dense<0.000000e+00> : vector<4x8x16xf32>
    %30 = tpu.matmul %1, %27, %cst_20 {dimension_numbers = #tpu.dot_dimension_numbers<[2], [1], [1], [2], [0, 0, 0, 1, 1, 2], [0], [0]>} : vector<4x8x8xf32>, vector<4x8x16xf32>, vector<4x8x16xf32> -> vector<4x8x16xf32>
    %31 = arith.mulf %27, %30 : vector<4x8x16xf32>
    %cst_21 = arith.constant dense<0.000000e+00> : vector<4x16xf32>
    %32 = vector.multi_reduction <add>, %31, %cst_21 [1] : vector<4x8x16xf32> to vector<4x16xf32>
    %cst_22 = arith.constant 0.000000e+00 : f32
    %33 = vector.broadcast %cst_22 : f32 to vector<4x16xf32>
    %34 = arith.maximumf %32, %33 : vector<4x16xf32>
    %35 = arith.mulf %4, %4 : vector<16x32xf32>
    %cst_23 = arith.constant dense<0.000000e+00> : vector<16xf32>
    %36 = vector.multi_reduction <add>, %35, %cst_23 [1] : vector<16x32xf32> to vector<16xf32>
    %37 = math.sqrt %36 : vector<16xf32>
    %38 = vector.shape_cast %37 : vector<16xf32> to vector<1x16xf32>
    %39 = math.sqrt %34 : vector<4x16xf32>
    %40 = vector.broadcast %38 : vector<1x16xf32> to vector<4x16xf32>
    %41 = arith.mulf %40, %39 : vector<4x16xf32>
    %cst_24 = arith.constant 9.99999993E-9 : f32
    %42 = vector.broadcast %cst_24 : f32 to vector<4x16xf32>
    %43 = arith.maximumf %41, %42 : vector<4x16xf32>
    %44 = arith.divf %29, %43 : vector<4x16xf32>
    %cst_25 = arith.constant 6.000000e+00 : f32
    %45 = vector.broadcast %cst_25 : f32 to vector<4x16xf32>
    %46 = arith.mulf %44, %45 : vector<4x16xf32>
    %47 = math.exp %46 : vector<4x16xf32>
    %48 = vector.broadcast %6 : vector<1x16xf32> to vector<4x16xf32>
    %49 = arith.mulf %47, %48 : vector<4x16xf32>
    %cst_26 = arith.constant dense<0.000000e+00> : vector<2x4xf32>
    %50 = tpu.matmul %2, %49, %cst_26 {dimension_numbers = #tpu.dot_dimension_numbers<[0], [1], [1], [0], [0, 1, 1, 0], [], []>} : vector<16x2xf32>, vector<4x16xf32>, vector<2x4xf32> -> vector<2x4xf32>
    %cst_27 = arith.constant 1.000000e-30 : f32
    %51 = vector.broadcast %cst_27 : f32 to vector<2x4xf32>
    %52 = arith.maximumf %50, %51 : vector<2x4xf32>
    %53 = math.log %52 : vector<2x4xf32>
    %cst_28 = arith.constant 0.166666672 : f32
    %54 = vector.broadcast %cst_28 : f32 to vector<2x4xf32>
    %55 = arith.mulf %53, %54 : vector<2x4xf32>
    %c0_29 = arith.constant 0 : index
    %c0_30 = arith.constant 0 : index
    %c0_31 = arith.constant 0 : index
    %56 = vector.load %arg6[%c0_29, %c0_30, %c0_31] : memref<1x2x4xf32, #tpu.memory_space<vmem>>, vector<1x2x4xf32>
    %57 = vector.shape_cast %56 : vector<1x2x4xf32> to vector<2x4xf32>
    %58 = vector.shape_cast %55 : vector<2x4xf32> to vector<1x2x4xf32>
    tpu.vector_store %arg6[%c0_29, %c0_30, %c0_31], %58 {strides = array<i32>} : memref<1x2x4xf32, #tpu.memory_space<vmem>>, vector<1x2x4xf32>,
    return
  }
  func.func @transform_0(%arg0: i32) -> (i32, i32, i32) {
    %c0_i32 = arith.constant 0 : i32
    %c0_i32_0 = arith.constant 0 : i32
    %c0_i32_1 = arith.constant 0 : i32
    %c0_i32_2 = arith.constant 0 : i32
    return %c0_i32, %c0_i32_0, %c0_i32_1 : i32, i32, i32
  }
  func.func @transform_1(%arg0: i32) -> (i32, i32, i32) {
    %c0_i32 = arith.constant 0 : i32
    %c0_i32_0 = arith.constant 0 : i32
    %c0_i32_1 = arith.constant 0 : i32
    %c0_i32_2 = arith.constant 0 : i32
    return %c0_i32, %c0_i32_0, %c0_i32_1 : i32, i32, i32
  }
  func.func @transform_2(%arg0: i32) -> (i32, i32) {
    %c0_i32 = arith.constant 0 : i32
    %c0_i32_0 = arith.constant 0 : i32
    %c0_i32_1 = arith.constant 0 : i32
    return %c0_i32, %c0_i32_0 : i32, i32
  }
  func.func @transform_3(%arg0: i32) -> (i32, i32, i32) {
    %c0_i32 = arith.constant 0 : i32
    %c0_i32_0 = arith.constant 0 : i32
    %c0_i32_1 = arith.constant 0 : i32
    return %arg0, %c0_i32, %c0_i32_0 : i32, i32, i32
  }
  func.func @transform_4(%arg0: i32) -> (i32, i32, i32) {
    %c0_i32 = arith.constant 0 : i32
    %c0_i32_0 = arith.constant 0 : i32
    %c0_i32_1 = arith.constant 0 : i32
    return %arg0, %c0_i32, %c0_i32_0 : i32, i32, i32
  }
  func.func @transform_5(%arg0: i32) -> (i32, i32, i32) {
    %c0_i32 = arith.constant 0 : i32
    %c0_i32_0 = arith.constant 0 : i32
    %c0_i32_1 = arith.constant 0 : i32
    return %arg0, %c0_i32, %c0_i32_0 : i32, i32, i32
  }
}

</mosaic_0001>

<llo_original>
// kernel: tpu_custom_call.1
$region0: #{tpu_custom_call.1}
  #allocation0 [shape = 'u32[]', space=smem, size = 0x4, offset = 0x4, fixed_abs, tag = 'smem constant byte address 0x4 - core index']
  #allocation1 [shape = 'u32[72,128]{1,0:T(1,128)}', space=vmem, size = 0x9000, scoped, tag = 'internal scratch']
  %s0 = inlined_call_operand.hbm [shape: f32[4,8,32], index: 0, kind: input, shape index: {}]
  %s1 = inlined_call_operand.hbm [shape: f32[4,8,8], index: 1, kind: input, shape index: {}]
  %s2 = inlined_call_operand.vmem [shape: f32[16,2], index: 2, kind: input, shape index: {}]
  %s3 = inlined_call_operand.hbm [shape: f32[2,16,32], index: 3, kind: input, shape index: {}]
  %s4 = inlined_call_operand.vmem [shape: f32[2,1,16], index: 4, kind: input, shape index: {}]
  %s5 = inlined_call_operand.hbm [shape: f32[2,2,4], index: 5, kind: output, shape index: {}]
  %s6 = sld [smem:[#allocation0]]
  $region65: #{tpu_custom_call.1} parent=0
    _
  %s8 = ssub.s32 1, %s6
  %s9 = scalar_select 0, %s8, %s6
  $region1: #{tpu_custom_call.1} parent=0
    #allocation2 [shape = 'u8[16384]{0}', space=vmem, size = 0x4000, scoped, tag = 'input window, operand 0, single buffered']
    #allocation3 [shape = 's32[2]{0}', space=sflag, size = 0x8, scoped, tag = 'scoped memory for tpu_custom_call.1']
    #allocation4 [shape = 's32[2]{0}', space=sflag, size = 0x8, scoped, tag = 'scoped memory for tpu_custom_call.1']
    #allocation5 [shape = 'u8[16384]{0}', space=vmem, size = 0x4000, scoped, tag = 'input window, operand 1, single buffered']
    #allocation6 [shape = 's32[1]{0}', space=sflag, size = 0x4, scoped, tag = 'scoped memory for tpu_custom_call.1']
    #allocation7 [shape = 'u8[16384]{0}', space=vmem, size = 0x4000, scoped, tag = 'input window, operand 3']
    #allocation8 [shape = 'u8[2048]{0}', space=vmem, size = 0x800, scoped, tag = 'output window, operand 0']
    %10 = vsyncpa [#allocation3], 0
    %11 = vsyncpa [#allocation6], 0
    %12 = vsyncpa [#allocation4], 0
    %s13 = scalar_lea.sflag [#allocation4], 1
    %14 = vsyncpa %s13, 0
    loop: start=0, step=1, limit=4
    $region2: #{tpu_custom_call.1} parent=1 // loop_pre_header
      _
    $region3: #{tpu_custom_call.1} parent=1 // loop_header
      %s16 = sphi 0, %s20
      %p17 = scmp.ge.s32.totalorder %s16, 4
      %s24 = sphi 0, %s24
      %s26 = sphi 0, %s24
      %s27 = sphi 0, %s26
      %s41 = sphi 0, %s27
      %s45 = sphi 0, %s45
      %s47 = sphi 0, %s45
      %s48 = sphi 0, %s47
      %s62 = sphi 0, %s48
      %s66 = sphi 0, %s66
      %s68 = sphi 0, %s66
      %s69 = sphi 0, %s68
      %s83 = sphi 0, %s69
      %s89 = sphi 0, %s91
      %s92 = sphi 0, %s89
      %s93 = sphi 0, %s92
      %s109 = sphi 0, %s93
      %s115 = sphi 0, %s117
      %s118 = sphi 0, %s115
      %s119 = sphi 0, %s118
      %s135 = sphi 0, %s119
      %s141 = sphi 0, %s143
      %s144 = sphi 0, %s141
      %s145 = sphi 0, %s144
      %s161 = sphi 0, %s145
    $region4: #{tpu_custom_call.1} parent=1 // loop_header_branch
      %19 = sbr.rel (%p17) target = $region8
    $region5: #{tpu_custom_call.1} parent=1 // loop_body
      %s21 = ssub.s32 %s16, 1
      %s22 = ssub.s32 %s16, 2
      %s23 = sadd.s32 %s16, 1
      %s25 = sadd.s32 %s24, 1
      %p28 = scmp.eq.s32.totalorder %s16, 1
      %p29 = scmp.ne.s32.totalorder %s24, %s26
      %p30 = scmp.eq.s32.totalorder %s16, 0
      %p31 = por %p29, %p30
      %p32 = scmp.ne.s32.totalorder %s24, %s26
      %p33 = scmp.eq.s32.totalorder %s21, 1
      %p34 = por %p32, %p33
      %p35 = scmp.ne.s32.totalorder %s26, %s27
      %p36 = scmp.eq.s32.totalorder %s21, 0
      %p37 = por %p35, %p36
      %p38 = scmp.ne.s32.totalorder %s26, %s27
      %p39 = scmp.eq.s32.totalorder %s22, 1
      %p40 = por %p38, %p39
      %p42 = scmp.ne.s32.totalorder %s27, %s41
      %p43 = scmp.eq.s32.totalorder %s22, 0
      %p44 = por %p42, %p43
      %s46 = sadd.s32 %s45, 1
      %p49 = scmp.eq.s32.totalorder %s16, 1
      %p50 = scmp.ne.s32.totalorder %s45, %s47
      %p51 = scmp.eq.s32.totalorder %s16, 0
      %p52 = por %p50, %p51
      %p53 = scmp.ne.s32.totalorder %s45, %s47
      %p54 = scmp.eq.s32.totalorder %s21, 1
      %p55 = por %p53, %p54
      %p56 = scmp.ne.s32.totalorder %s47, %s48
      %p57 = scmp.eq.s32.totalorder %s21, 0
      %p58 = por %p56, %p57
      %p59 = scmp.ne.s32.totalorder %s47, %s48
      %p60 = scmp.eq.s32.totalorder %s22, 1
      %p61 = por %p59, %p60
      %p63 = scmp.ne.s32.totalorder %s48, %s62
      %p64 = scmp.eq.s32.totalorder %s22, 0
      %p65 = por %p63, %p64
      %s67 = sadd.s32 %s66, 1
      %p70 = scmp.eq.s32.totalorder %s16, 1
      %p71 = scmp.ne.s32.totalorder %s66, %s68
      %p72 = scmp.eq.s32.totalorder %s16, 0
      %p73 = por %p71, %p72
      %p74 = scmp.ne.s32.totalorder %s66, %s68
      %p75 = scmp.eq.s32.totalorder %s21, 1
      %p76 = por %p74, %p75
      %p77 = scmp.ne.s32.totalorder %s68, %s69
      %p78 = scmp.eq.s32.totalorder %s21, 0
      %p79 = por %p77, %p78
      %p80 = scmp.ne.s32.totalorder %s68, %s69
      %p81 = scmp.eq.s32.totalorder %s22, 1
      %p82 = por %p80, %p81
      %p84 = scmp.ne.s32.totalorder %s69, %s83
      %p85 = scmp.eq.s32.totalorder %s22, 0
      %p86 = por %p84, %p85
      %s87 = ssub.s32 %s16, %s23
      %p88 = scmp.eq.s32.totalorder %s87, 0
      %s90 = sadd.s32 %s89, 1
      %s91 = scalar_select %p88, %s89, %s90
      %p94 = pneg %p88
      %p95 = scmp.eq.s32.totalorder %s16, 1
      %p96 = por %p94, %p95
      %p97 = scmp.ne.s32.totalorder %s89, %s92
      %p98 = scmp.eq.s32.totalorder %s16, 0
      %p99 = por %p97, %p98
      %p100 = scmp.ne.s32.totalorder %s89, %s92
      %p101 = scmp.eq.s32.totalorder %s21, 1
      %p102 = por %p100, %p101
      %p103 = scmp.ne.s32.totalorder %s92, %s93
      %p104 = scmp.eq.s32.totalorder %s21, 0
      %p105 = por %p103, %p104
      %p106 = scmp.ne.s32.totalorder %s92, %s93
      %p107 = scmp.eq.s32.totalorder %s22, 1
      %p108 = por %p106, %p107
      %p110 = scmp.ne.s32.totalorder %s93, %s109
      %p111 = scmp.eq.s32.totalorder %s22, 0
      %p112 = por %p110, %p111
      %s113 = ssub.s32 %s16, %s23
      %p114 = scmp.eq.s32.totalorder %s113, 0
      %s116 = sadd.s32 %s115, 1
      %s117 = scalar_select %p114, %s115, %s116
      %p120 = pneg %p114
      %p121 = scmp.eq.s32.totalorder %s16, 1
      %p122 = por %p120, %p121
      %p123 = scmp.ne.s32.totalorder %s115, %s118
      %p124 = scmp.eq.s32.totalorder %s16, 0
      %p125 = por %p123, %p124
      %p126 = scmp.ne.s32.totalorder %s115, %s118
      %p127 = scmp.eq.s32.totalorder %s21, 1
      %p128 = por %p126, %p127
      %p129 = scmp.ne.s32.totalorder %s118, %s119
      %p130 = scmp.eq.s32.totalorder %s21, 0
      %p131 = por %p129, %p130
      %p132 = scmp.ne.s32.totalorder %s118, %s119
      %p133 = scmp.eq.s32.totalorder %s22, 1
      %p134 = por %p132, %p133
      %p136 = scmp.ne.s32.totalorder %s119, %s135
      %p137 = scmp.eq.s32.totalorder %s22, 0
      %p138 = por %p136, %p137
      %s139 = ssub.s32 %s16, %s23
      %p140 = scmp.eq.s32.totalorder %s139, 0
      %s142 = sadd.s32 %s141, 1
      %s143 = scalar_select %p140, %s141, %s142
      %p146 = pneg %p140
      %p147 = scmp.eq.s32.totalorder %s16, 1
      %p148 = por %p146, %p147
      %p149 = scmp.ne.s32.totalorder %s141, %s144
      %p150 = scmp.eq.s32.totalorder %s16, 0
      %p151 = por %p149, %p150
      %p152 = scmp.ne.s32.totalorder %s141, %s144
      %p153 = scmp.eq.s32.totalorder %s21, 1
      %p154 = por %p152, %p153
      %p155 = scmp.ne.s32.totalorder %s144, %s145
      %p156 = scmp.eq.s32.totalorder %s21, 0
      %p157 = por %p155, %p156
      %p158 = scmp.ne.s32.totalorder %s144, %s145
      %p159 = scmp.eq.s32.totalorder %s22, 1
      %p160 = por %p158, %p159
      %p162 = scmp.ne.s32.totalorder %s145, %s161
      %p163 = scmp.eq.s32.totalorder %s22, 0
      %p164 = por %p162, %p163
      %p165 = scmp.le.s32.totalorder 1, %s16
      %p166 = scmp.lt.s32.totalorder %s16, 3
      %p167 = pnand %p165, %p166
      %p168 = pneg %p167
      // Predicated region
      $region9: #{tpu_custom_call.1} parent=5 // pred_check
        _
      $region10: #{tpu_custom_call.1} parent=5 // pred_check_branch
        %170 = sbr.rel (%p167) target = $region12
      $region11: #{tpu_custom_call.1} parent=5 // pred_region
        %s171 = ssub.s32 %s16, 1
        // Predicated region
        $region13: #{tpu_custom_call.1} parent=11 // pred_check
          %p172 = pneg %p37
        $region14: #{tpu_custom_call.1} parent=11 // pred_check_branch
          %174 = sbr.rel (%p172) target = $region16
        $region15: #{tpu_custom_call.1} parent=11 // pred_region
          %176 = vsyncadd [#allocation3], 0
          %s177 = sshll.u32 %s0, 4
          %s178 = int_to_ptr.hbm [resolvable:$true] %s177
          %s179 = sshll.u32 [#allocation2], 4
          %s180 = int_to_ptr.vmem [resolvable:$true] %s179
          %185 = dma.hbm_to_vmem [thread:$0]  %s178, 512, %s180, [#allocation3], 128, 128, 8
        $region16: #{tpu_custom_call.1} parent=11 // pred_fallthru
          _
        // Predicated region
        $region17: #{tpu_custom_call.1} parent=11 // pred_check
          %p186 = pneg %p58
        $region18: #{tpu_custom_call.1} parent=11 // pred_check_branch
          %188 = sbr.rel (%p186) target = $region20
        $region19: #{tpu_custom_call.1} parent=11 // pred_region
          %190 = vsyncadd [#allocation6], 0
          %s191 = sshll.u32 %s1, 4
          %s192 = int_to_ptr.hbm [resolvable:$true] %s191
          %s193 = sshll.u32 [#allocation5], 4
          %s194 = int_to_ptr.vmem [resolvable:$true] %s193
          %199 = dma.hbm_to_vmem [thread:$0]  %s192, 512, %s194, [#allocation6], 128, 128, 8
        $region20: #{tpu_custom_call.1} parent=11 // pred_fallthru
          _
        // Predicated region
        $region21: #{tpu_custom_call.1} parent=11 // pred_check
          %p200 = pneg %p79
        $region22: #{tpu_custom_call.1} parent=11 // pred_check_branch
          %202 = sbr.rel (%p200) target = $region24
        $region23: #{tpu_custom_call.1} parent=11 // pred_region
          _
        $region24: #{tpu_custom_call.1} parent=11 // pred_fallthru
          _
      $region12: #{tpu_custom_call.1} parent=5 // pred_fallthru
        _
      %p203 = scmp.lt.s32.totalorder %s16, 2
      // Predicated region
      $region25: #{tpu_custom_call.1} parent=5 // pred_check
        %p204 = pneg %p203
      $region26: #{tpu_custom_call.1} parent=5 // pred_check_branch
        %206 = sbr.rel (%p204) target = $region28
      $region27: #{tpu_custom_call.1} parent=5 // pred_region
        // Predicated region
        $region29: #{tpu_custom_call.1} parent=27 // pred_check
          %p207 = pneg %p99
        $region30: #{tpu_custom_call.1} parent=27 // pred_check_branch
          %209 = sbr.rel (%p207) target = $region32
        $region31: #{tpu_custom_call.1} parent=27 // pred_region
          %s210 = sand.u32 %s16, 1
          %s211 = scalar_lea.sflag [#allocation3], %s210
          %s212 = sand.u32 %s89, 1
          %s213 = smul.addr %s212, 16
          %s214 = scalar_lea.vmem [#allocation7], %s213
          %216 = vsyncadd %s211, 0
          %s217 = smul.addr %s16, 2
          %s218 = smul.addr %s217, 8
          %s219 = scalar_lea.hbm %s3, %s218
          %s220 = sshll.u32 %s219, 4
          %s221 = int_to_ptr.hbm [resolvable:$true] %s220
          %s222 = sshll.u32 %s214, 4
          %s223 = int_to_ptr.vmem [resolvable:$true] %s222
          %228 = dma.hbm_to_vmem [thread:$0]  %s221, 256, %s223, %s211, 128, 128, 8
        $region32: #{tpu_custom_call.1} parent=27 // pred_fallthru
          _
        // Predicated region
        $region33: #{tpu_custom_call.1} parent=27 // pred_check
          %p229 = pneg %p125
        $region34: #{tpu_custom_call.1} parent=27 // pred_check_branch
          %231 = sbr.rel (%p229) target = $region36
        $region35: #{tpu_custom_call.1} parent=27 // pred_region
          %p232 = scmp.lt.s32.totalorder %s16, 1
          %s233 = scalar_select %p232, %s16, 1
          %s234 = scalar_lea.vmem %s4, %s233
        $region36: #{tpu_custom_call.1} parent=27 // pred_fallthru
          _
      $region28: #{tpu_custom_call.1} parent=5 // pred_fallthru
        _
      %p235 = scmp.le.s32.totalorder 1, %s16
      %p236 = scmp.lt.s32.totalorder %s16, 3
      %p237 = pnand %p235, %p236
      %p238 = pneg %p237
      // Predicated region
      $region37: #{tpu_custom_call.1} parent=5 // pred_check
        _
      $region38: #{tpu_custom_call.1} parent=5 // pred_check_branch
        %240 = sbr.rel (%p237) target = $region40
      $region39: #{tpu_custom_call.1} parent=5 // pred_region
        %s241 = ssub.s32 %s16, 1
        // Predicated region
        $region41: #{tpu_custom_call.1} parent=39 // pred_check
          %p242 = pneg %p37
        $region42: #{tpu_custom_call.1} parent=39 // pred_check_branch
          %244 = sbr.rel (%p242) target = $region44
        $region43: #{tpu_custom_call.1} parent=39 // pred_region
          %246 = dma.done [#allocation3], 512
        $region44: #{tpu_custom_call.1} parent=39 // pred_fallthru
          _
        // Predicated region
        $region45: #{tpu_custom_call.1} parent=39 // pred_check
          %p247 = pneg %p58
        $region46: #{tpu_custom_call.1} parent=39 // pred_check_branch
          %249 = sbr.rel (%p247) target = $region48
        $region47: #{tpu_custom_call.1} parent=39 // pred_region
          %251 = dma.done [#allocation6], 512
        $region48: #{tpu_custom_call.1} parent=39 // pred_fallthru
          _
        %s252 = sand.u32 %s21, 1
        %s253 = scalar_lea.sflag [#allocation3], %s252
        %s254 = sand.u32 %s92, 1
        %s255 = smul.addr %s254, 16
        %s256 = scalar_lea.vmem [#allocation7], %s255
        // Predicated region
        $region49: #{tpu_custom_call.1} parent=39 // pred_check
          %p257 = pneg %p105
        $region50: #{tpu_custom_call.1} parent=39 // pred_check_branch
          %259 = sbr.rel (%p257) target = $region52
        $region51: #{tpu_custom_call.1} parent=39 // pred_region
          %261 = dma.done %s253, 256
        $region52: #{tpu_custom_call.1} parent=39 // pred_fallthru
          _
        %p262 = pneg %p37
        %p263 = pneg %p34
        %p264 = pneg %p58
        %p265 = pneg %p55
        %p266 = pneg %p79
        %p267 = pneg %p76
        %s268 = sand.u32 %s21, 1
        %s269 = scalar_lea.sflag [#allocation3], %s268
        %s270 = sand.u32 %s92, 1
        %s271 = smul.addr %s270, 16
        %s272 = scalar_lea.vmem [#allocation7], %s271
        %p273 = pneg %p105
        %p274 = pneg %p102
        %p275 = scmp.lt.s32.totalorder %s21, 1
        %s276 = scalar_select %p275, %s21, 1
        %s277 = scalar_lea.vmem %s4, %s276
        %p278 = pneg %p131
        %p279 = pneg %p128
        %p280 = pneg %p157
        %p281 = pneg %p154
        %s282 = sand.u32 %s144, 1
        %s283 = scalar_lea.sflag [#allocation4], %s282
        %s284 = sand.u32 %s144, 1
        %s285 = smul.addr %s284, 2
        %s286 = scalar_lea.vmem [#allocation8], %s285
        %p287 = scmp.lt.s32.totalorder %s21, 1
        %s288 = scalar_select %p287, %s21, 1
        %s289 = scalar_lea.vmem %s4, %s288
        %v290 = vld [vmem:[#allocation2] sm:$0xff]
        %v291 = vld [vmem:[#allocation2 + $0x8] sm:$0xff]
        %v292 = vld [vmem:[#allocation2 + $0x10] sm:$0xff]
        %v293 = vld [vmem:[#allocation2 + $0x18] sm:$0xff]
        %v294 = vld [vmem:[#allocation5] sm:$0xff]
        %v295 = vld [vmem:[#allocation5 + $0x8] sm:$0xff]
        %v296 = vld [vmem:[#allocation5 + $0x10] sm:$0xff]
        %v297 = vld [vmem:[#allocation5 + $0x18] sm:$0xff]
        %v298 = vld [vmem:[%s2] sm:$0xff]
        %v299 = vld [vmem:[%s2 + $0x8] sm:$0xff]
        %v300 = vld [vmem:[%s256] sm:$0xff]
        %v301 = vld [vmem:[%s256 + $0x8] sm:$0xff]
        %v302 = vld [vmem:[%s289] sm:$0x1]
        %vm303 = vcmask 261120
        %v305 = vsel %vm303, %v290, 0
        %v308 = vsel %vm303, %v291, 0
        %v311 = vsel %vm303, %v292, 0
        %v314 = vsel %vm303, %v293, 0
        %v317 = vsel %vm303, %v300, 0
        %v320 = vsel %vm303, %v301, 0
        %322 = vmatpush.xpose.msra.mxu0 0.0
        %323 = vmatpush.xpose.msra.mxu0 0.0
        %324 = vmatpush.xpose.msra.mxu0 0.0
        %325 = vmatpush.xpose.msra.mxu0 0.0
        %326 = vmatpush.xpose.msra.mxu0 0.0
        %327 = vmatpush.xpose.msra.mxu0 0.0
        %328 = vmatpush.xpose.msra.mxu0 0.0
        %329 = vmatpush.xpose.msra.mxu0 0.0
        %330 = vmatpush.xpose.msra.mxu0 0.0
        %331 = vmatpush.xpose.msra.mxu0 0.0
        %332 = vmatpush.xpose.msra.mxu0 0.0
        %333 = vmatpush.xpose.msra.mxu0 0.0
        %334 = vmatpush.xpose.msra.mxu0 0.0
        %335 = vmatpush.xpose.msra.mxu0 0.0
        %336 = vmatpush.xpose.msra.mxu0 %v320
        %337 = vmatpush.xpose.msra.mxu0 %v317
        %338 = vmatmul.f32.gmra.mxu0 %v305
        %v339 = vpop.f32.mrf.mxu0
        %v340 = vadd.f32 0.0, %v339
        %341 = vmatmul.f32.gmra.mxu0 %v308
        %v342 = vpop.f32.mrf.mxu0
        %v343 = vadd.f32 0.0, %v342
        %344 = vmatmul.f32.gmra.mxu0 %v311
        %v345 = vpop.f32.mrf.mxu0
        %v346 = vadd.f32 0.0, %v345
        %347 = vmatmul.f32.gmra.mxu0 %v314
        %v348 = vpop.f32.mrf.mxu0
        %v349 = vadd.f32 0.0, %v348
        %350 = vdwg.mxu0
        %v352 = vperm.slane %v302, 0
        %v354 = vmul.f32 %v340, %v352
        %v355 = vmul.f32 %v343, %v352
        %v356 = vmul.f32 %v346, %v352
        %v357 = vmul.f32 %v349, %v352
        %v358 = vmul.f32 %v354, 0.1
        %v359 = vmul.f32 %v355, 0.1
        %v360 = vmul.f32 %v356, 0.1
        %v361 = vmul.f32 %v357, 0.1
        %v362 = vmax.f32 %v354, %v358
        %v363 = vmax.f32 %v355, %v359
        %v364 = vmax.f32 %v356, %v360
        %v365 = vmax.f32 %v357, %v361
        %v366 = vmul.f32 %v362, %v362
        %v367 = vmul.f32 %v363, %v363
        %v368 = vmul.f32 %v364, %v364
        %v369 = vmul.f32 %v365, %v365
        %vm370 = vcmask 130048
        %v372 = vsel %vm370, %v366, 0
        %v375 = vsel %vm370, %v367, 0
        %v378 = vsel %vm370, %v368, 0
        %v381 = vsel %vm370, %v369, 0
        %383 = vmatpush.msra.mxu0 0.0
        %384 = vmatpush.msra.mxu0 0.0
        %385 = vmatpush.msra.mxu0 0.0
        %386 = vmatpush.msra.mxu0 0.0
        %387 = vmatpush.msra.mxu0 0.0
        %388 = vmatpush.msra.mxu0 0.0
        %389 = vmatpush.msra.mxu0 0.0
        %390 = vmatpush.msra.mxu0 0.0
        %391 = vmatpush.msra.mxu0 0.0
        %392 = vmatpush.msra.mxu0 0.0
        %393 = vmatpush.msra.mxu0 0.0
        %394 = vmatpush.msra.mxu0 0.0
        %395 = vmatpush.msra.mxu0 0.0
        %396 = vmatpush.msra.mxu0 0.0
        %397 = vmatpush.msra.mxu0 %v299
        %398 = vmatpush.msra.mxu0 %v298
        %399 = vmatmul.f32.gmra.mxu0 %v372
        %v400 = vpop.f32.mrf.mxu0
        %v401 = vadd.f32 0.0, %v400
        %402 = vmatmul.f32.gmra.mxu0 %v375
        %v403 = vpop.f32.mrf.mxu0
        %v404 = vadd.f32 0.0, %v403
        %405 = vmatmul.f32.gmra.mxu0 %v378
        %v406 = vpop.f32.mrf.mxu0
        %v407 = vadd.f32 0.0, %v406
        %408 = vmatmul.f32.gmra.mxu0 %v381
        %v409 = vpop.f32.mrf.mxu0
        %v410 = vadd.f32 0.0, %v409
        %411 = vdwg.mxu0
        %vm412 = vcmask 15360
        %v414 = vsel %vm412, %v401, 0
        %v417 = vsel %vm412, %v404, 0
        %v420 = vsel %vm412, %v407, 0
        %v423 = vsel %vm412, %v410, 0
        %v426 = vsel %vm412, %v298, 0
        %v429 = vsel %vm412, %v299, 0
        %431 = vmatpush.xpose.msra.mxu0 0.0
        %432 = vmatpush.xpose.msra.mxu0 0.0
        %433 = vmatpush.xpose.msra.mxu0 0.0
        %434 = vmatpush.xpose.msra.mxu0 0.0
        %435 = vmatpush.xpose.msra.mxu0 0.0
        %436 = vmatpush.xpose.msra.mxu0 0.0
        %437 = vmatpush.xpose.msra.mxu0 0.0
        %438 = vmatpush.xpose.msra.mxu0 0.0
        %439 = vmatpush.xpose.msra.mxu0 0.0
        %440 = vmatpush.xpose.msra.mxu0 0.0
        %441 = vmatpush.xpose.msra.mxu0 0.0
        %442 = vmatpush.xpose.msra.mxu0 0.0
        %443 = vmatpush.xpose.msra.mxu0 0.0
        %444 = vmatpush.xpose.msra.mxu0 0.0
        %445 = vmatpush.xpose.msra.mxu0 %v429
        %446 = vmatpush.xpose.msra.mxu0 %v426
        %447 = vmatmul.f32.gmra.mxu0 %v414
        %v448 = vpop.f32.mrf.mxu0
        %v449 = vadd.f32 0.0, %v448
        %450 = vmatmul.f32.gmra.mxu0 %v417
        %v451 = vpop.f32.mrf.mxu0
        %v452 = vadd.f32 0.0, %v451
        %453 = vmatmul.f32.gmra.mxu0 %v420
        %v454 = vpop.f32.mrf.mxu0
        %v455 = vadd.f32 0.0, %v454
        %456 = vmatmul.f32.gmra.mxu0 %v423
        %v457 = vpop.f32.mrf.mxu0
        %v458 = vadd.f32 0.0, %v457
        %459 = vdwg.mxu0
        %v460 = vrsqrt.pop %v449
        %v461 = vmul.f32 %v460, %v449
        %v462 = vmul.f32 %v461, %v460
        %v463 = vmul.f32 0.5, %v462
        %v464 = vsub.f32 1.5, %v463
        %v465 = vmul.f32 %v460, %v464
        %v466 = vmul.f32 %v449, %v465
        %vm467 = vcmp.eq.f32.partialorder %v449, inf
        %v468 = vsel %vm467, %v449, %v466
        %vm469 = vcmp.eq.f32.partialorder %v449, 0.0
        %v470 = vand.u32 %v449, 2147483648
        %v471 = vsel %vm469, %v470, %v468
        %v472 = vrsqrt.pop %v452
        %v473 = vmul.f32 %v472, %v452
        %v474 = vmul.f32 %v473, %v472
        %v475 = vmul.f32 0.5, %v474
        %v476 = vsub.f32 1.5, %v475
        %v477 = vmul.f32 %v472, %v476
        %v478 = vmul.f32 %v452, %v477
        %vm479 = vcmp.eq.f32.partialorder %v452, inf
        %v480 = vsel %vm479, %v452, %v478
        %vm481 = vcmp.eq.f32.partialorder %v452, 0.0
        %v482 = vand.u32 %v452, 2147483648
        %v483 = vsel %vm481, %v482, %v480
        %v484 = vrsqrt.pop %v455
        %v485 = vmul.f32 %v484, %v455
        %v486 = vmul.f32 %v485, %v484
        %v487 = vmul.f32 0.5, %v486
        %v488 = vsub.f32 1.5, %v487
        %v489 = vmul.f32 %v484, %v488
        %v490 = vmul.f32 %v455, %v489
        %vm491 = vcmp.eq.f32.partialorder %v455, inf
        %v492 = vsel %vm491, %v455, %v490
        %vm493 = vcmp.eq.f32.partialorder %v455, 0.0
        %v494 = vand.u32 %v455, 2147483648
        %v495 = vsel %vm493, %v494, %v492
        %v496 = vrsqrt.pop %v458
        %v497 = vmul.f32 %v496, %v458
        %v498 = vmul.f32 %v497, %v496
        %v499 = vmul.f32 0.5, %v498
        %v500 = vsub.f32 1.5, %v499
        %v501 = vmul.f32 %v496, %v500
        %v502 = vmul.f32 %v458, %v501
        %vm503 = vcmp.eq.f32.partialorder %v458, inf
        %v504 = vsel %vm503, %v458, %v502
        %vm505 = vcmp.eq.f32.partialorder %v458, 0.0
        %v506 = vand.u32 %v458, 2147483648
        %v507 = vsel %vm505, %v506, %v504
        %v508 = vadd.f32 %v471, 1e-08
        %v509 = vadd.f32 %v483, 1e-08
        %v510 = vadd.f32 %v495, 1e-08
        %v511 = vadd.f32 %v507, 1e-08
        %v512 = vrcp.pop %v508
        %v513 = vmul.f32 %v508, %v512
        %v514 = vsub.f32 1.0, %v513
        %v515 = vmul.f32 %v512, %v514
        %v516 = vadd.f32 %v512, %v515
        %vm517 = vweird.f32 %v508
        %vm518 = vweird.f32 %v512
        %vm519 = vmor %vm517, %vm518
        %v520 = vsel %vm519, %v512, %v516
        %v521 = vand.u32 2147483647, %v508
        %vm522 = vcmp.eq.f32.partialorder %v521, 8.507059e+37
        %v523 = vand.u32 %v508, 2147483648
        %v524 = vor.u32 1.1754944e-38, %v523
        %v525 = vsel %vm522, %v524, %v520
        %v526 = vmul.f32 %v362, %v525
        %v527 = vrcp.pop %v509
        %v528 = vmul.f32 %v509, %v527
        %v529 = vsub.f32 1.0, %v528
        %v530 = vmul.f32 %v527, %v529
        %v531 = vadd.f32 %v527, %v530
        %vm532 = vweird.f32 %v509
        %vm533 = vweird.f32 %v527
        %vm534 = vmor %vm532, %vm533
        %v535 = vsel %vm534, %v527, %v531
        %v536 = vand.u32 2147483647, %v509
        %vm537 = vcmp.eq.f32.partialorder %v536, 8.507059e+37
        %v538 = vand.u32 %v509, 2147483648
        %v539 = vor.u32 1.1754944e-38, %v538
        %v540 = vsel %vm537, %v539, %v535
        %v541 = vmul.f32 %v363, %v540
        %v542 = vrcp.pop %v510
        %v543 = vmul.f32 %v510, %v542
        %v544 = vsub.f32 1.0, %v543
        %v545 = vmul.f32 %v542, %v544
        %v546 = vadd.f32 %v542, %v545
        %vm547 = vweird.f32 %v510
        %vm548 = vweird.f32 %v542
        %vm549 = vmor %vm547, %vm548
        %v550 = vsel %vm549, %v542, %v546
        %v551 = vand.u32 2147483647, %v510
        %vm552 = vcmp.eq.f32.partialorder %v551, 8.507059e+37
        %v553 = vand.u32 %v510, 2147483648
        %v554 = vor.u32 1.1754944e-38, %v553
        %v555 = vsel %vm552, %v554, %v550
        %v556 = vmul.f32 %v364, %v555
        %v557 = vrcp.pop %v511
        %v558 = vmul.f32 %v511, %v557
        %v559 = vsub.f32 1.0, %v558
        %v560 = vmul.f32 %v557, %v559
        %v561 = vadd.f32 %v557, %v560
        %vm562 = vweird.f32 %v511
        %vm563 = vweird.f32 %v557
        %vm564 = vmor %vm562, %vm563
        %v565 = vsel %vm564, %v557, %v561
        %v566 = vand.u32 2147483647, %v511
        %vm567 = vcmp.eq.f32.partialorder %v566, 8.507059e+37
        %v568 = vand.u32 %v511, 2147483648
        %v569 = vor.u32 1.1754944e-38, %v568
        %v570 = vsel %vm567, %v569, %v565
        %v571 = vmul.f32 %v365, %v570
        %v572 = vmul.f32 %v526, 9.0
        %v573 = vmul.f32 %v541, 9.0
        %v574 = vmul.f32 %v556, 9.0
        %v575 = vmul.f32 %v571, 9.0
        %v576 = vmul.f32 %v572, 1.442695
        %v577 = vpow.pop %v576
        %v578 = vmul.f32 %v573, 1.442695
        %v579 = vpow.pop %v578
        %v580 = vmul.f32 %v574, 1.442695
        %v581 = vpow.pop %v580
        %v582 = vmul.f32 %v575, 1.442695
        %v583 = vpow.pop %v582
        %v584 = vsel %vm370, %v577, 0.0
        %v585 = vrot.slane %v584, 4
        %v586 = vadd.f32 %v584, %v585
        %v587 = vrot.slane %v586, 2
        %v588 = vadd.f32 %v586, %v587
        %v589 = vrot.slane %v588, 1
        %v590 = vadd.f32 %v588, %v589
        %v591 = vsel %vm370, %v579, 0.0
        %v592 = vrot.slane %v591, 4
        %v593 = vadd.f32 %v591, %v592
        %v594 = vrot.slane %v593, 2
        %v595 = vadd.f32 %v593, %v594
        %v596 = vrot.slane %v595, 1
        %v597 = vadd.f32 %v595, %v596
        %v598 = vsel %vm370, %v581, 0.0
        %v599 = vrot.slane %v598, 4
        %v600 = vadd.f32 %v598, %v599
        %v601 = vrot.slane %v600, 2
        %v602 = vadd.f32 %v600, %v601
        %v603 = vrot.slane %v602, 1
        %v604 = vadd.f32 %v602, %v603
        %v605 = vsel %vm370, %v583, 0.0
        %v606 = vrot.slane %v605, 4
        %v607 = vadd.f32 %v605, %v606
        %v608 = vrot.slane %v607, 2
        %v609 = vadd.f32 %v607, %v608
        %v610 = vrot.slane %v609, 1
        %v611 = vadd.f32 %v609, %v610
        %v612 = vrcp.pop %v590
        %v613 = vmul.f32 %v590, %v612
        %v614 = vsub.f32 1.0, %v613
        %v615 = vmul.f32 %v612, %v614
        %v616 = vadd.f32 %v612, %v615
        %vm617 = vweird.f32 %v590
        %vm618 = vweird.f32 %v612
        %vm619 = vmor %vm617, %vm618
        %v620 = vsel %vm619, %v612, %v616
        %v621 = vand.u32 2147483647, %v590
        %vm622 = vcmp.eq.f32.partialorder %v621, 8.507059e+37
        %v623 = vand.u32 %v590, 2147483648
        %v624 = vor.u32 1.1754944e-38, %v623
        %v625 = vsel %vm622, %v624, %v620
        %v626 = vmul.f32 %v577, %v625
        %v627 = vrcp.pop %v597
        %v628 = vmul.f32 %v597, %v627
        %v629 = vsub.f32 1.0, %v628
        %v630 = vmul.f32 %v627, %v629
        %v631 = vadd.f32 %v627, %v630
        %vm632 = vweird.f32 %v597
        %vm633 = vweird.f32 %v627
        %vm634 = vmor %vm632, %vm633
        %v635 = vsel %vm634, %v627, %v631
        %v636 = vand.u32 2147483647, %v597
        %vm637 = vcmp.eq.f32.partialorder %v636, 8.507059e+37
        %v638 = vand.u32 %v597, 2147483648
        %v639 = vor.u32 1.1754944e-38, %v638
        %v640 = vsel %vm637, %v639, %v635
        %v641 = vmul.f32 %v579, %v640
        %v642 = vrcp.pop %v604
        %v643 = vmul.f32 %v604, %v642
        %v644 = vsub.f32 1.0, %v643
        %v645 = vmul.f32 %v642, %v644
        %v646 = vadd.f32 %v642, %v645
        %vm647 = vweird.f32 %v604
        %vm648 = vweird.f32 %v642
        %vm649 = vmor %vm647, %vm648
        %v650 = vsel %vm649, %v642, %v646
        %v651 = vand.u32 2147483647, %v604
        %vm652 = vcmp.eq.f32.partialorder %v651, 8.507059e+37
        %v653 = vand.u32 %v604, 2147483648
        %v654 = vor.u32 1.1754944e-38, %v653
        %v655 = vsel %vm652, %v654, %v650
        %v656 = vmul.f32 %v581, %v655
        %v657 = vrcp.pop %v611
        %v658 = vmul.f32 %v611, %v657
        %v659 = vsub.f32 1.0, %v658
        %v660 = vmul.f32 %v657, %v659
        %v661 = vadd.f32 %v657, %v660
        %vm662 = vweird.f32 %v611
        %vm663 = vweird.f32 %v657
        %vm664 = vmor %vm662, %vm663
        %v665 = vsel %vm664, %v657, %v661
        %v666 = vand.u32 2147483647, %v611
        %vm667 = vcmp.eq.f32.partialorder %v666, 8.507059e+37
        %v668 = vand.u32 %v611, 2147483648
        %v669 = vor.u32 1.1754944e-38, %v668
        %v670 = vsel %vm667, %v669, %v665
        %v671 = vmul.f32 %v583, %v670
        %v672 = vmul.f32 %v626, %v340
        %v673 = vmul.f32 %v641, %v343
        %v674 = vmul.f32 %v656, %v346
        %v675 = vmul.f32 %v671, %v349
        %v676 = vsel %vm370, %v672, 0.0
        %v677 = vrot.slane %v676, 4
        %v678 = vadd.f32 %v676, %v677
        %v679 = vrot.slane %v678, 2
        %v680 = vadd.f32 %v678, %v679
        %v681 = vrot.slane %v680, 1
        %v682 = vadd.f32 %v680, %v681
        %v683 = vsel %vm370, %v673, 0.0
        %v684 = vrot.slane %v683, 4
        %v685 = vadd.f32 %v683, %v684
        %v686 = vrot.slane %v685, 2
        %v687 = vadd.f32 %v685, %v686
        %v688 = vrot.slane %v687, 1
        %v689 = vadd.f32 %v687, %v688
        %v690 = vsel %vm370, %v674, 0.0
        %v691 = vrot.slane %v690, 4
        %v692 = vadd.f32 %v690, %v691
        %v693 = vrot.slane %v692, 2
        %v694 = vadd.f32 %v692, %v693
        %v695 = vrot.slane %v694, 1
        %v696 = vadd.f32 %v694, %v695
        %v697 = vsel %vm370, %v675, 0.0
        %v698 = vrot.slane %v697, 4
        %v699 = vadd.f32 %v697, %v698
        %v700 = vrot.slane %v699, 2
        %v701 = vadd.f32 %v699, %v700
        %v702 = vrot.slane %v701, 1
        %v703 = vadd.f32 %v701, %v702
        %vm704 = vcmask 64512
        %v706 = vsel %vm704, %v294, 0
        %708 = vmatpush.msra.mxu0 0.0
        %709 = vmatpush.msra.mxu0 0.0
        %710 = vmatpush.msra.mxu0 0.0
        %711 = vmatpush.msra.mxu0 0.0
        %712 = vmatpush.msra.mxu0 0.0
        %713 = vmatpush.msra.mxu0 0.0
        %714 = vmatpush.msra.mxu0 0.0
        %715 = vmatpush.msra.mxu0 0.0
        %716 = vmatpush.msra.mxu0 0.0
        %717 = vmatpush.msra.mxu0 0.0
        %718 = vmatpush.msra.mxu0 0.0
        %719 = vmatpush.msra.mxu0 0.0
        %720 = vmatpush.msra.mxu0 0.0
        %721 = vmatpush.msra.mxu0 0.0
        %722 = vmatpush.msra.mxu0 0.0
        %723 = vmatpush.msra.mxu0 %v626
        %724 = vmatmul.f32.gmra.mxu0 %v706
        %v725 = vpop.f32.mrf.mxu0
        %v726 = vadd.f32 0.0, %v725
        %727 = vdwg.mxu0
        %v729 = vsel %vm704, %v295, 0
        %731 = vmatpush.msra.mxu0 0.0
        %732 = vmatpush.msra.mxu0 0.0
        %733 = vmatpush.msra.mxu0 0.0
        %734 = vmatpush.msra.mxu0 0.0
        %735 = vmatpush.msra.mxu0 0.0
        %736 = vmatpush.msra.mxu0 0.0
        %737 = vmatpush.msra.mxu0 0.0
        %738 = vmatpush.msra.mxu0 0.0
        %739 = vmatpush.msra.mxu0 0.0
        %740 = vmatpush.msra.mxu0 0.0
        %741 = vmatpush.msra.mxu0 0.0
        %742 = vmatpush.msra.mxu0 0.0
        %743 = vmatpush.msra.mxu0 0.0
        %744 = vmatpush.msra.mxu0 0.0
        %745 = vmatpush.msra.mxu0 0.0
        %746 = vmatpush.msra.mxu0 %v641
        %747 = vmatmul.f32.gmra.mxu0 %v729
        %v748 = vpop.f32.mrf.mxu0
        %v749 = vadd.f32 0.0, %v748
        %750 = vdwg.mxu0
        %v752 = vsel %vm704, %v296, 0
        %754 = vmatpush.msra.mxu0 0.0
        %755 = vmatpush.msra.mxu0 0.0
        %756 = vmatpush.msra.mxu0 0.0
        %757 = vmatpush.msra.mxu0 0.0
        %758 = vmatpush.msra.mxu0 0.0
        %759 = vmatpush.msra.mxu0 0.0
        %760 = vmatpush.msra.mxu0 0.0
        %761 = vmatpush.msra.mxu0 0.0
        %762 = vmatpush.msra.mxu0 0.0
        %763 = vmatpush.msra.mxu0 0.0
        %764 = vmatpush.msra.mxu0 0.0
        %765 = vmatpush.msra.mxu0 0.0
        %766 = vmatpush.msra.mxu0 0.0
        %767 = vmatpush.msra.mxu0 0.0
        %768 = vmatpush.msra.mxu0 0.0
        %769 = vmatpush.msra.mxu0 %v656
        %770 = vmatmul.f32.gmra.mxu0 %v752
        %v771 = vpop.f32.mrf.mxu0
        %v772 = vadd.f32 0.0, %v771
        %773 = vdwg.mxu0
        %v775 = vsel %vm704, %v297, 0
        %777 = vmatpush.msra.mxu0 0.0
        %778 = vmatpush.msra.mxu0 0.0
        %779 = vmatpush.msra.mxu0 0.0
        %780 = vmatpush.msra.mxu0 0.0
        %781 = vmatpush.msra.mxu0 0.0
        %782 = vmatpush.msra.mxu0 0.0
        %783 = vmatpush.msra.mxu0 0.0
        %784 = vmatpush.msra.mxu0 0.0
        %785 = vmatpush.msra.mxu0 0.0
        %786 = vmatpush.msra.mxu0 0.0
        %787 = vmatpush.msra.mxu0 0.0
        %788 = vmatpush.msra.mxu0 0.0
        %789 = vmatpush.msra.mxu0 0.0
        %790 = vmatpush.msra.mxu0 0.0
        %791 = vmatpush.msra.mxu0 0.0
        %792 = vmatpush.msra.mxu0 %v671
        %793 = vmatmul.f32.gmra.mxu0 %v775
        %v794 = vpop.f32.mrf.mxu0
        %v795 = vadd.f32 0.0, %v794
        %796 = vdwg.mxu0
        %v797 = vmul.f32 %v626, %v726
        %v798 = vmul.f32 %v641, %v749
        %v799 = vmul.f32 %v656, %v772
        %v800 = vmul.f32 %v671, %v795
        %v801 = vsel %vm370, %v797, 0.0
        %v802 = vrot.slane %v801, 4
        %v803 = vadd.f32 %v801, %v802
        %v804 = vrot.slane %v803, 2
        %v805 = vadd.f32 %v803, %v804
        %v806 = vrot.slane %v805, 1
        %v807 = vadd.f32 %v805, %v806
        %v808 = vsel %vm370, %v798, 0.0
        %v809 = vrot.slane %v808, 4
        %v810 = vadd.f32 %v808, %v809
        %v811 = vrot.slane %v810, 2
        %v812 = vadd.f32 %v810, %v811
        %v813 = vrot.slane %v812, 1
        %v814 = vadd.f32 %v812, %v813
        %v815 = vsel %vm370, %v799, 0.0
        %v816 = vrot.slane %v815, 4
        %v817 = vadd.f32 %v815, %v816
        %v818 = vrot.slane %v817, 2
        %v819 = vadd.f32 %v817, %v818
        %v820 = vrot.slane %v819, 1
        %v821 = vadd.f32 %v819, %v820
        %v822 = vsel %vm370, %v800, 0.0
        %v823 = vrot.slane %v822, 4
        %v824 = vadd.f32 %v822, %v823
        %v825 = vrot.slane %v824, 2
        %v826 = vadd.f32 %v824, %v825
        %v827 = vrot.slane %v826, 1
        %v828 = vadd.f32 %v826, %v827
        %v829 = vmax.f32 %v807, 0.0
        %v830 = vmax.f32 %v814, 0.0
        %v831 = vmax.f32 %v821, 0.0
        %v832 = vmax.f32 %v828, 0.0
        %v833 = vmul.f32 %v300, %v300
        %v834 = vmul.f32 %v301, %v301
        %v835 = vsel %vm303, %v833, 0.0
        %836 = vadd.xlane.f32.xlu0 %v835
        %v837 = vpop.xlane.xlu0 %836
        %v838 = vsel %vm303, %v834, 0.0
        %839 = vadd.xlane.f32.xlu0 %v838
        %v840 = vpop.xlane.xlu0 %839
        %v841 = vrsqrt.pop %v837
        %v842 = vmul.f32 %v841, %v837
        %v843 = vmul.f32 %v842, %v841
        %v844 = vmul.f32 0.5, %v843
        %v845 = vsub.f32 1.5, %v844
        %v846 = vmul.f32 %v841, %v845
        %v847 = vmul.f32 %v837, %v846
        %vm848 = vcmp.eq.f32.partialorder %v837, inf
        %v849 = vsel %vm848, %v837, %v847
        %vm850 = vcmp.eq.f32.partialorder %v837, 0.0
        %v851 = vand.u32 %v837, 2147483648
        %v852 = vsel %vm850, %v851, %v849
        %v853 = vrsqrt.pop %v840
        %v854 = vmul.f32 %v853, %v840
        %v855 = vmul.f32 %v854, %v853
        %v856 = vmul.f32 0.5, %v855
        %v857 = vsub.f32 1.5, %v856
        %v858 = vmul.f32 %v853, %v857
        %v859 = vmul.f32 %v840, %v858
        %vm860 = vcmp.eq.f32.partialorder %v840, inf
        %v861 = vsel %vm860, %v840, %v859
        %vm862 = vcmp.eq.f32.partialorder %v840, 0.0
        %v863 = vand.u32 %v840, 2147483648
        %v864 = vsel %vm862, %v863, %v861
        %v865 = vrsqrt.pop %v829
        %v866 = vmul.f32 %v865, %v829
        %v867 = vmul.f32 %v866, %v865
        %v868 = vmul.f32 0.5, %v867
        %v869 = vsub.f32 1.5, %v868
        %v870 = vmul.f32 %v865, %v869
        %v871 = vmul.f32 %v829, %v870
        %vm872 = vcmp.eq.f32.partialorder %v829, inf
        %v873 = vsel %vm872, %v829, %v871
        %vm874 = vcmp.eq.f32.partialorder %v829, 0.0
        %v875 = vand.u32 %v829, 2147483648
        %v876 = vsel %vm874, %v875, %v873
        %v877 = vrsqrt.pop %v830
        %v878 = vmul.f32 %v877, %v830
        %v879 = vmul.f32 %v878, %v877
        %v880 = vmul.f32 0.5, %v879
        %v881 = vsub.f32 1.5, %v880
        %v882 = vmul.f32 %v877, %v881
        %v883 = vmul.f32 %v830, %v882
        %vm884 = vcmp.eq.f32.partialorder %v830, inf
        %v885 = vsel %vm884, %v830, %v883
        %vm886 = vcmp.eq.f32.partialorder %v830, 0.0
        %v887 = vand.u32 %v830, 2147483648
        %v888 = vsel %vm886, %v887, %v885
        %v889 = vrsqrt.pop %v831
        %v890 = vmul.f32 %v889, %v831
        %v891 = vmul.f32 %v890, %v889
        %v892 = vmul.f32 0.5, %v891
        %v893 = vsub.f32 1.5, %v892
        %v894 = vmul.f32 %v889, %v893
        %v895 = vmul.f32 %v831, %v894
        %vm896 = vcmp.eq.f32.partialorder %v831, inf
        %v897 = vsel %vm896, %v831, %v895
        %vm898 = vcmp.eq.f32.partialorder %v831, 0.0
        %v899 = vand.u32 %v831, 2147483648
        %v900 = vsel %vm898, %v899, %v897
        %v901 = vrsqrt.pop %v832
        %v902 = vmul.f32 %v901, %v832
        %v903 = vmul.f32 %v902, %v901
        %v904 = vmul.f32 0.5, %v903
        %v905 = vsub.f32 1.5, %v904
        %v906 = vmul.f32 %v901, %v905
        %v907 = vmul.f32 %v832, %v906
        %vm908 = vcmp.eq.f32.partialorder %v832, inf
        %v909 = vsel %vm908, %v832, %v907
        %vm910 = vcmp.eq.f32.partialorder %v832, 0.0
        %v911 = vand.u32 %v832, 2147483648
        %v912 = vsel %vm910, %v911, %v909
        %v917 = vlaneseq
        %v918 = vshrl.u32 %v917, 7
        %920 = vset.pattern.permute.xlu0 %v918
        %921 = vperm.xlu0 %920, %v876
        %v922 = vpop.permute.xlu0 %921
        %v923 = vlaneseq
        %v924 = vshrl.u32 %v923, 7
        %v925 = vadd.s32 %v924, 8
        %926 = vset.pattern.permute.xlu0 %v925
        %927 = vperm.xlu0 %926, %v876
        %v928 = vpop.permute.xlu0 %927
        %v929 = vlaneseq
        %v930 = vshrl.u32 %v929, 7
        %932 = vset.pattern.permute.xlu0 %v930
        %933 = vperm.xlu0 %932, %v888
        %v934 = vpop.permute.xlu0 %933
        %v935 = vlaneseq
        %v936 = vshrl.u32 %v935, 7
        %v937 = vadd.s32 %v936, 8
        %938 = vset.pattern.permute.xlu0 %v937
        %939 = vperm.xlu0 %938, %v888
        %v940 = vpop.permute.xlu0 %939
        %v941 = vlaneseq
        %v942 = vshrl.u32 %v941, 7
        %944 = vset.pattern.permute.xlu0 %v942
        %945 = vperm.xlu0 %944, %v900
        %v946 = vpop.permute.xlu0 %945
        %v947 = vlaneseq
        %v948 = vshrl.u32 %v947, 7
        %v949 = vadd.s32 %v948, 8
        %950 = vset.pattern.permute.xlu0 %v949
        %951 = vperm.xlu0 %950, %v900
        %v952 = vpop.permute.xlu0 %951
        %v953 = vlaneseq
        %v954 = vshrl.u32 %v953, 7
        %956 = vset.pattern.permute.xlu0 %v954
        %957 = vperm.xlu0 %956, %v912
        %v958 = vpop.permute.xlu0 %957
        %v959 = vlaneseq
        %v960 = vshrl.u32 %v959, 7
        %v961 = vadd.s32 %v960, 8
        %962 = vset.pattern.permute.xlu0 %v961
        %963 = vperm.xlu0 %962, %v912
        %v964 = vpop.permute.xlu0 %963
        %v973 = vmul.f32 %v852, %v922
        %v974 = vmul.f32 %v864, %v928
        %v975 = vmul.f32 %v852, %v934
        %v976 = vmul.f32 %v864, %v940
        %v977 = vmul.f32 %v852, %v946
        %v978 = vmul.f32 %v864, %v952
        %v979 = vmul.f32 %v852, %v958
        %v980 = vmul.f32 %v864, %v964
        %v981 = vmax.f32 %v973, 1e-08
        %v982 = vmax.f32 %v974, 1e-08
        %v983 = vmax.f32 %v975, 1e-08
        %v984 = vmax.f32 %v976, 1e-08
        %v985 = vmax.f32 %v977, 1e-08
        %v986 = vmax.f32 %v978, 1e-08
        %v987 = vmax.f32 %v979, 1e-08
        %v988 = vmax.f32 %v980, 1e-08
        %997 = vset.pattern.permute.xlu0 0
        %998 = vperm.xlu0 %997, %v981
        %v999 = vpop.permute.xlu0 %998
        %1000 = vset.pattern.permute.xlu0 0
        %1001 = vperm.xlu0 %1000, %v982
        %v1002 = vpop.permute.xlu0 %1001
        %1003 = vset.pattern.permute.xlu0 0
        %1004 = vperm.xlu0 %1003, %v983
        %v1005 = vpop.permute.xlu0 %1004
        %1006 = vset.pattern.permute.xlu0 0
        %1007 = vperm.xlu0 %1006, %v984
        %v1008 = vpop.permute.xlu0 %1007
        %1009 = vset.pattern.permute.xlu0 0
        %1010 = vperm.xlu0 %1009, %v985
        %v1011 = vpop.permute.xlu0 %1010
        %1012 = vset.pattern.permute.xlu0 0
        %1013 = vperm.xlu0 %1012, %v986
        %v1014 = vpop.permute.xlu0 %1013
        %1015 = vset.pattern.permute.xlu0 0
        %1016 = vperm.xlu0 %1015, %v987
        %v1017 = vpop.permute.xlu0 %1016
        %1018 = vset.pattern.permute.xlu0 0
        %1019 = vperm.xlu0 %1018, %v988
        %v1020 = vpop.permute.xlu0 %1019
        %v1021 = vlaneseq
        %v1022 = vand.u32 %v1021, 127
        %v1023 = vperm.slane %v999, %v1022
        %v1024 = vadd.s32 %v1022, 4294967288
        %v1025 = vperm.slane %v1002, %v1024
        %vm1026 = vcmask 130112
        %v1027 = vsel %vm1026, %v1025, %v1023
        %v1028 = vperm.slane %v1005, %v1022
        %v1029 = vperm.slane %v1008, %v1024
        %v1030 = vsel %vm1026, %v1029, %v1028
        %v1031 = vperm.slane %v1011, %v1022
        %v1032 = vperm.slane %v1014, %v1024
        %v1033 = vsel %vm1026, %v1032, %v1031
        %v1034 = vperm.slane %v1017, %v1022
        %v1035 = vperm.slane %v1020, %v1024
        %v1036 = vsel %vm1026, %v1035, %v1034
        %v1041 = vrcp.pop %v1027
        %v1042 = vmul.f32 %v1027, %v1041
        %v1043 = vsub.f32 1.0, %v1042
        %v1044 = vmul.f32 %v1041, %v1043
        %v1045 = vadd.f32 %v1041, %v1044
        %vm1046 = vweird.f32 %v1027
        %vm1047 = vweird.f32 %v1041
        %vm1048 = vmor %vm1046, %vm1047
        %v1049 = vsel %vm1048, %v1041, %v1045
        %v1050 = vand.u32 2147483647, %v1027
        %vm1051 = vcmp.eq.f32.partialorder %v1050, 8.507059e+37
        %v1052 = vand.u32 %v1027, 2147483648
        %v1053 = vor.u32 1.1754944e-38, %v1052
        %v1054 = vsel %vm1051, %v1053, %v1049
        %v1055 = vmul.f32 %v682, %v1054
        %v1056 = vrcp.pop %v1030
        %v1057 = vmul.f32 %v1030, %v1056
        %v1058 = vsub.f32 1.0, %v1057
        %v1059 = vmul.f32 %v1056, %v1058
        %v1060 = vadd.f32 %v1056, %v1059
        %vm1061 = vweird.f32 %v1030
        %vm1062 = vweird.f32 %v1056
        %vm1063 = vmor %vm1061, %vm1062
        %v1064 = vsel %vm1063, %v1056, %v1060
        %v1065 = vand.u32 2147483647, %v1030
        %vm1066 = vcmp.eq.f32.partialorder %v1065, 8.507059e+37
        %v1067 = vand.u32 %v1030, 2147483648
        %v1068 = vor.u32 1.1754944e-38, %v1067
        %v1069 = vsel %vm1066, %v1068, %v1064
        %v1070 = vmul.f32 %v689, %v1069
        %v1071 = vrcp.pop %v1033
        %v1072 = vmul.f32 %v1033, %v1071
        %v1073 = vsub.f32 1.0, %v1072
        %v1074 = vmul.f32 %v1071, %v1073
        %v1075 = vadd.f32 %v1071, %v1074
        %vm1076 = vweird.f32 %v1033
        %vm1077 = vweird.f32 %v1071
        %vm1078 = vmor %vm1076, %vm1077
        %v1079 = vsel %vm1078, %v1071, %v1075
        %v1080 = vand.u32 2147483647, %v1033
        %vm1081 = vcmp.eq.f32.partialorder %v1080, 8.507059e+37
        %v1082 = vand.u32 %v1033, 2147483648
        %v1083 = vor.u32 1.1754944e-38, %v1082
        %v1084 = vsel %vm1081, %v1083, %v1079
        %v1085 = vmul.f32 %v696, %v1084
        %v1086 = vrcp.pop %v1036
        %v1087 = vmul.f32 %v1036, %v1086
        %v1088 = vsub.f32 1.0, %v1087
        %v1089 = vmul.f32 %v1086, %v1088
        %v1090 = vadd.f32 %v1086, %v1089
        %vm1091 = vweird.f32 %v1036
        %vm1092 = vweird.f32 %v1086
        %vm1093 = vmor %vm1091, %vm1092
        %v1094 = vsel %vm1093, %v1086, %v1090
        %v1095 = vand.u32 2147483647, %v1036
        %vm1096 = vcmp.eq.f32.partialorder %v1095, 8.507059e+37
        %v1097 = vand.u32 %v1036, 2147483648
        %v1098 = vor.u32 1.1754944e-38, %v1097
        %v1099 = vsel %vm1096, %v1098, %v1094
        %v1100 = vmul.f32 %v703, %v1099
        %v1101 = vmul.f32 %v1055, 6.0
        %v1102 = vmul.f32 %v1070, 6.0
        %v1103 = vmul.f32 %v1085, 6.0
        %v1104 = vmul.f32 %v1100, 6.0
        %v1105 = vmul.f32 %v1101, 1.442695
        %v1106 = vpow.pop %v1105
        %v1107 = vmul.f32 %v1102, 1.442695
        %v1108 = vpow.pop %v1107
        %v1109 = vmul.f32 %v1103, 1.442695
        %v1110 = vpow.pop %v1109
        %v1111 = vmul.f32 %v1104, 1.442695
        %v1112 = vpow.pop %v1111
        %v1113 = vmul.f32 %v1106, %v352
        %v1114 = vmul.f32 %v1108, %v352
        %v1115 = vmul.f32 %v1110, %v352
        %v1116 = vmul.f32 %v1112, %v352
        %1117 = vxpose.xlu0.b32.start [1/16] %v298, 128
        %1118 = vxpose.xlu0.b32.cont [2/16] %v299, 128
        %1119 = vxpose.xlu0.b32.cont [3/16] 0.0, 128
        %1120 = vxpose.xlu0.b32.cont [4/16] 0.0, 128
        %1121 = vxpose.xlu0.b32.cont [5/16] 0.0, 128
        %1122 = vxpose.xlu0.b32.cont [6/16] 0.0, 128
        %1123 = vxpose.xlu0.b32.cont [7/16] 0.0, 128
        %1124 = vxpose.xlu0.b32.cont [8/16] 0.0, 128
        %1125 = vxpose.xlu0.b32.cont [9/16] 0.0, 128
        %1126 = vxpose.xlu0.b32.cont [10/16] 0.0, 128
        %1127 = vxpose.xlu0.b32.cont [11/16] 0.0, 128
        %1128 = vxpose.xlu0.b32.cont [12/16] 0.0, 128
        %1129 = vxpose.xlu0.b32.cont [13/16] 0.0, 128
        %1130 = vxpose.xlu0.b32.cont [14/16] 0.0, 128
        %1131 = vxpose.xlu0.b32.cont [15/16] 0.0, 128
        %1132 = vxpose.xlu0.b32.end [16/16] 0.0, 128
        %v1133 = vpop.trf.xlu0
        %v1134 = vpop.trf.xlu0
        %v1135 = vpop.trf.xlu0
        %v1136 = vpop.trf.xlu0
        %v1137 = vpop.trf.xlu0
        %v1138 = vpop.trf.xlu0
        %v1139 = vpop.trf.xlu0
        %v1140 = vpop.trf.xlu0
        %v1141 = vpop.trf.xlu0
        %v1142 = vpop.trf.xlu0
        %v1143 = vpop.trf.xlu0
        %v1144 = vpop.trf.xlu0
        %v1145 = vpop.trf.xlu0
        %v1146 = vpop.trf.xlu0
        %v1147 = vpop.trf.xlu0
        %v1148 = vpop.trf.xlu0
        %v1153 = vrot.slane %v1114, 7
        %vm1154 = vcmask 1041409
        %v1155 = vsel %vm1154, %v1153, %v1113
        %v1156 = vrot.slane %v1115, 6
        %vm1157 = vcmask 1042434
        %v1158 = vsel %vm1157, %v1156, %v1155
        %v1159 = vrot.slane %v1116, 5
        %vm1160 = vcmask 1043459
        %v1161 = vsel %vm1160, %v1159, %v1158
        %v1163 = vsel %vm370, %v1133, 0
        %v1165 = vsel %vm370, %v1161, 0
        %1167 = vmatpush.xpose.msra.mxu0 0.0
        %1168 = vmatpush.xpose.msra.mxu0 0.0
        %1169 = vmatpush.xpose.msra.mxu0 0.0
        %1170 = vmatpush.xpose.msra.mxu0 0.0
        %1171 = vmatpush.xpose.msra.mxu0 0.0
        %1172 = vmatpush.xpose.msra.mxu0 0.0
        %1173 = vmatpush.xpose.msra.mxu0 0.0
        %1174 = vmatpush.xpose.msra.mxu0 0.0
        %1175 = vmatpush.xpose.msra.mxu0 0.0
        %1176 = vmatpush.xpose.msra.mxu0 0.0
        %1177 = vmatpush.xpose.msra.mxu0 0.0
        %1178 = vmatpush.xpose.msra.mxu0 0.0
        %1179 = vmatpush.xpose.msra.mxu0 0.0
        %1180 = vmatpush.xpose.msra.mxu0 0.0
        %1181 = vmatpush.xpose.msra.mxu0 0.0
        %1182 = vmatpush.xpose.msra.mxu0 %v1165
        %1183 = vmatmul.f32.gmra.mxu0 %v1163
        %v1184 = vpop.f32.mrf.mxu0
        %v1185 = vadd.f32 0.0, %v1184
        %1186 = vdwg.mxu0
        %v1187 = vmax.f32 %v1185, 1e-30
        %v1188 = vlog2.pop %v1187
        %v1189 = vmul.f32 %v1188, 0.6931472
        %v1190 = vmul.f32 %v1189, 0.16666667
        %vm1191 = vcmask 25600
        %1192 = vst.msk [vmem:[%s286] sm:$0x3] %vm1191, %v1190
        %s1193 = sand.u32 %s144, 1
        %s1194 = scalar_lea.sflag [#allocation4], %s1193
        %s1195 = sand.u32 %s144, 1
        %s1196 = smul.addr %s1195, 2
        %s1197 = scalar_lea.vmem [#allocation8], %s1196
        // Predicated region
        $region53: #{tpu_custom_call.1} parent=39 // pred_check
          %p1198 = pneg %p154
        $region54: #{tpu_custom_call.1} parent=39 // pred_check_branch
          %1200 = sbr.rel (%p1198) target = $region56
        $region55: #{tpu_custom_call.1} parent=39 // pred_region
          %1202 = vsyncadd %s1194, 0
          %s1203 = smul.addr %s21, 2
          %s1204 = scalar_lea.hbm %s5, %s1203
          %s1206 = sshll.u32 %s1197, 4
          %s1207 = int_to_ptr.vmem [resolvable:$true] %s1206
          %s1208 = sshll.u32 %s1204, 4
          %s1209 = int_to_ptr.hbm [resolvable:$true] %s1208
          %1211 = dma.vmem_to_hbm [thread:$0]  %s1207, 32, %s1209, %s1194
        $region56: #{tpu_custom_call.1} parent=39 // pred_fallthru
          _
      $region40: #{tpu_custom_call.1} parent=5 // pred_fallthru
        _
      %p1212 = scmp.le.s32.totalorder 2, %s16
      // Predicated region
      $region57: #{tpu_custom_call.1} parent=5 // pred_check
        %p1213 = pneg %p1212
      $region58: #{tpu_custom_call.1} parent=5 // pred_check_branch
        %1215 = sbr.rel (%p1213) target = $region60
      $region59: #{tpu_custom_call.1} parent=5 // pred_region
        %s1216 = ssub.s32 %s16, 2
        // Predicated region
        $region61: #{tpu_custom_call.1} parent=59 // pred_check
          %p1217 = pneg %p160
        $region62: #{tpu_custom_call.1} parent=59 // pred_check_branch
          %1219 = sbr.rel (%p1217) target = $region64
        $region63: #{tpu_custom_call.1} parent=59 // pred_region
          %s1220 = sand.u32 %s145, 1
          %s1221 = scalar_lea.sflag [#allocation4], %s1220
          %s1222 = sand.u32 %s145, 1
          %s1223 = smul.addr %s1222, 2
          %s1224 = scalar_lea.vmem [#allocation8], %s1223
          %1226 = dma.done %s1221, 32
        $region64: #{tpu_custom_call.1} parent=59 // pred_fallthru
          _
      $region60: #{tpu_custom_call.1} parent=5 // pred_fallthru
        _
    $region6: #{tpu_custom_call.1} parent=1 // loop_footer
      %s20 = sadd.s32 1, %s16
    $region7: #{tpu_custom_call.1} parent=1 // loop_footer_branch
      %15 = sbr.rel target = $region3
    $region8: #{tpu_custom_call.1} parent=1 // loop_exit
      _
    %1227 = vsyncpa [#allocation3], 1
    %s1228 = scalar_lea.sflag [#allocation3], 1
    %1229 = vsyncpa %s1228, 1
    %1230 = vsyncpa [#allocation6], 1
    %1231 = vsyncpa [#allocation4], 1
    %s1232 = scalar_lea.sflag [#allocation4], 1
    %1233 = vsyncpa %s1232, 1

// kernel: tpu_custom_call.1
$region0: #{tpu_custom_call.1}
  #allocation0 [shape = 'u32[]', space=smem, size = 0x4, offset = 0x4, fixed_abs, tag = 'smem constant byte address 0x4 - core index']
  #allocation1 [shape = 'u32[72,128]{1,0:T(1,128)}', space=vmem, size = 0x9000, scoped, tag = 'internal scratch']
  %s0 = inlined_call_operand.hbm [shape: f32[4,8,32], index: 0, kind: input, shape index: {}]
  %s1 = inlined_call_operand.hbm [shape: f32[4,8,8], index: 1, kind: input, shape index: {}]
  %s2 = inlined_call_operand.vmem [shape: f32[16,2], index: 2, kind: input, shape index: {}]
  %s3 = inlined_call_operand.hbm [shape: f32[2,16,32], index: 3, kind: input, shape index: {}]
  %s4 = inlined_call_operand.vmem [shape: f32[2,1,16], index: 4, kind: input, shape index: {}]
  %s5 = inlined_call_operand.hbm [shape: f32[2,2,4], index: 5, kind: output, shape index: {}]
  %s6 = sld [smem:[#allocation0]]
  $region65: #{tpu_custom_call.1} parent=0
    _
  %s8 = ssub.s32 1, %s6
  %s9 = scalar_select 0, %s8, %s6
  $region1: #{tpu_custom_call.1} parent=0
    #allocation2 [shape = 'u8[16384]{0}', space=vmem, size = 0x4000, scoped, tag = 'input window, operand 0, single buffered']
    #allocation3 [shape = 's32[2]{0}', space=sflag, size = 0x8, scoped, tag = 'scoped memory for tpu_custom_call.1']
    #allocation4 [shape = 's32[2]{0}', space=sflag, size = 0x8, scoped, tag = 'scoped memory for tpu_custom_call.1']
    #allocation5 [shape = 'u8[16384]{0}', space=vmem, size = 0x4000, scoped, tag = 'input window, operand 1, single buffered']
    #allocation6 [shape = 's32[1]{0}', space=sflag, size = 0x4, scoped, tag = 'scoped memory for tpu_custom_call.1']
    #allocation7 [shape = 'u8[16384]{0}', space=vmem, size = 0x4000, scoped, tag = 'input window, operand 3']
    #allocation8 [shape = 'u8[2048]{0}', space=vmem, size = 0x800, scoped, tag = 'output window, operand 0']
    %10 = vsyncpa [#allocation3], 0
    %11 = vsyncpa [#allocation6], 0
    %12 = vsyncpa [#allocation4], 0
    %s13 = scalar_lea.sflag [#allocation4], 1
    %14 = vsyncpa %s13, 0
    loop: start=0, step=1, limit=4
    $region2: #{tpu_custom_call.1} parent=1 // loop_pre_header
      _
    $region3: #{tpu_custom_call.1} parent=1 // loop_header
      %s16 = sphi 0, %s20
      %p17 = scmp.ge.s32.totalorder %s16, 4
      %s24 = sphi 0, %s24
      %s26 = sphi 0, %s24
      %s27 = sphi 0, %s26
      %s41 = sphi 0, %s27
      %s45 = sphi 0, %s45
      %s47 = sphi 0, %s45
      %s48 = sphi 0, %s47
      %s62 = sphi 0, %s48
      %s66 = sphi 0, %s66
      %s68 = sphi 0, %s66
      %s69 = sphi 0, %s68
      %s83 = sphi 0, %s69
      %s89 = sphi 0, %s91
      %s92 = sphi 0, %s89
      %s93 = sphi 0, %s92
      %s109 = sphi 0, %s93
      %s115 = sphi 0, %s117
      %s118 = sphi 0, %s115
      %s119 = sphi 0, %s118
      %s135 = sphi 0, %s119
      %s141 = sphi 0, %s143
      %s144 = sphi 0, %s141
      %s145 = sphi 0, %s144
      %s161 = sphi 0, %s145
    $region4: #{tpu_custom_call.1} parent=1 // loop_header_branch
      %19 = sbr.rel (%p17) target = $region8
    $region5: #{tpu_custom_call.1} parent=1 // loop_body
      %s21 = ssub.s32 %s16, 1
      %s22 = ssub.s32 %s16, 2
      %s23 = sadd.s32 %s16, 1
      %s25 = sadd.s32 %s24, 1
      %p28 = scmp.eq.s32.totalorder %s16, 1
      %p29 = scmp.ne.s32.totalorder %s24, %s26
      %p30 = scmp.eq.s32.totalorder %s16, 0
      %p31 = por %p29, %p30
      %p32 = scmp.ne.s32.totalorder %s24, %s26
      %p33 = scmp.eq.s32.totalorder %s21, 1
      %p34 = por %p32, %p33
      %p35 = scmp.ne.s32.totalorder %s26, %s27
      %p36 = scmp.eq.s32.totalorder %s21, 0
      %p37 = por %p35, %p36
      %p38 = scmp.ne.s32.totalorder %s26, %s27
      %p39 = scmp.eq.s32.totalorder %s22, 1
      %p40 = por %p38, %p39
      %p42 = scmp.ne.s32.totalorder %s27, %s41
      %p43 = scmp.eq.s32.totalorder %s22, 0
      %p44 = por %p42, %p43
      %s46 = sadd.s32 %s45, 1
      %p49 = scmp.eq.s32.totalorder %s16, 1
      %p50 = scmp.ne.s32.totalorder %s45, %s47
      %p51 = scmp.eq.s32.totalorder %s16, 0
      %p52 = por %p50, %p51
      %p53 = scmp.ne.s32.totalorder %s45, %s47
      %p54 = scmp.eq.s32.totalorder %s21, 1
      %p55 = por %p53, %p54
      %p56 = scmp.ne.s32.totalorder %s47, %s48
      %p57 = scmp.eq.s32.totalorder %s21, 0
      %p58 = por %p56, %p57
      %p59 = scmp.ne.s32.totalorder %s47, %s48
      %p60 = scmp.eq.s32.totalorder %s22, 1
      %p61 = por %p59, %p60
      %p63 = scmp.ne.s32.totalorder %s48, %s62
      %p64 = scmp.eq.s32.totalorder %s22, 0
      %p65 = por %p63, %p64
      %s67 = sadd.s32 %s66, 1
      %p70 = scmp.eq.s32.totalorder %s16, 1
      %p71 = scmp.ne.s32.totalorder %s66, %s68
      %p72 = scmp.eq.s32.totalorder %s16, 0
      %p73 = por %p71, %p72
      %p74 = scmp.ne.s32.totalorder %s66, %s68
      %p75 = scmp.eq.s32.totalorder %s21, 1
      %p76 = por %p74, %p75
      %p77 = scmp.ne.s32.totalorder %s68, %s69
      %p78 = scmp.eq.s32.totalorder %s21, 0
      %p79 = por %p77, %p78
      %p80 = scmp.ne.s32.totalorder %s68, %s69
      %p81 = scmp.eq.s32.totalorder %s22, 1
      %p82 = por %p80, %p81
      %p84 = scmp.ne.s32.totalorder %s69, %s83
      %p85 = scmp.eq.s32.totalorder %s22, 0
      %p86 = por %p84, %p85
      %s87 = ssub.s32 %s16, %s23
      %p88 = scmp.eq.s32.totalorder %s87, 0
      %s90 = sadd.s32 %s89, 1
      %s91 = scalar_select %p88, %s89, %s90
      %p94 = pneg %p88
      %p95 = scmp.eq.s32.totalorder %s16, 1
      %p96 = por %p94, %p95
      %p97 = scmp.ne.s32.totalorder %s89, %s92
      %p98 = scmp.eq.s32.totalorder %s16, 0
      %p99 = por %p97, %p98
      %p100 = scmp.ne.s32.totalorder %s89, %s92
      %p101 = scmp.eq.s32.totalorder %s21, 1
      %p102 = por %p100, %p101
      %p103 = scmp.ne.s32.totalorder %s92, %s93
      %p104 = scmp.eq.s32.totalorder %s21, 0
      %p105 = por %p103, %p104
      %p106 = scmp.ne.s32.totalorder %s92, %s93
      %p107 = scmp.eq.s32.totalorder %s22, 1
      %p108 = por %p106, %p107
      %p110 = scmp.ne.s32.totalorder %s93, %s109
      %p111 = scmp.eq.s32.totalorder %s22, 0
      %p112 = por %p110, %p111
      %s113 = ssub.s32 %s16, %s23
      %p114 = scmp.eq.s32.totalorder %s113, 0
      %s116 = sadd.s32 %s115, 1
      %s117 = scalar_select %p114, %s115, %s116
      %p120 = pneg %p114
      %p121 = scmp.eq.s32.totalorder %s16, 1
      %p122 = por %p120, %p121
      %p123 = scmp.ne.s32.totalorder %s115, %s118
      %p124 = scmp.eq.s32.totalorder %s16, 0
      %p125 = por %p123, %p124
      %p126 = scmp.ne.s32.totalorder %s115, %s118
      %p127 = scmp.eq.s32.totalorder %s21, 1
      %p128 = por %p126, %p127
      %p129 = scmp.ne.s32.totalorder %s118, %s119
      %p130 = scmp.eq.s32.totalorder %s21, 0
      %p131 = por %p129, %p130
      %p132 = scmp.ne.s32.totalorder %s118, %s119
      %p133 = scmp.eq.s32.totalorder %s22, 1
      %p134 = por %p132, %p133
      %p136 = scmp.ne.s32.totalorder %s119, %s135
      %p137 = scmp.eq.s32.totalorder %s22, 0
      %p138 = por %p136, %p137
      %s139 = ssub.s32 %s16, %s23
      %p140 = scmp.eq.s32.totalorder %s139, 0
      %s142 = sadd.s32 %s141, 1
      %s143 = scalar_select %p140, %s141, %s142
      %p146 = pneg %p140
      %p147 = scmp.eq.s32.totalorder %s16, 1
      %p148 = por %p146, %p147
      %p149 = scmp.ne.s32.totalorder %s141, %s144
      %p150 = scmp.eq.s32.totalorder %s16, 0
      %p151 = por %p149, %p150
      %p152 = scmp.ne.s32.totalorder %s141, %s144
      %p153 = scmp.eq.s32.totalorder %s21, 1
      %p154 = por %p152, %p153
      %p155 = scmp.ne.s32.totalorder %s144, %s145
      %p156 = scmp.eq.s32.totalorder %s21, 0
      %p157 = por %p155, %p156
      %p158 = scmp.ne.s32.totalorder %s144, %s145
      %p159 = scmp.eq.s32.totalorder %s22, 1
      %p160 = por %p158, %p159
      %p162 = scmp.ne.s32.totalorder %s145, %s161
      %p163 = scmp.eq.s32.totalorder %s22, 0
      %p164 = por %p162, %p163
      %p165 = scmp.le.s32.totalorder 1, %s16
      %p166 = scmp.lt.s32.totalorder %s16, 3
      %p167 = pnand %p165, %p166
      %p168 = pneg %p167
      // Predicated region
      $region9: #{tpu_custom_call.1} parent=5 // pred_check
        _
      $region10: #{tpu_custom_call.1} parent=5 // pred_check_branch
        %170 = sbr.rel (%p167) target = $region12
      $region11: #{tpu_custom_call.1} parent=5 // pred_region
        %s171 = ssub.s32 %s16, 1
        // Predicated region
        $region13: #{tpu_custom_call.1} parent=11 // pred_check
          %p172 = pneg %p37
        $region14: #{tpu_custom_call.1} parent=11 // pred_check_branch
          %174 = sbr.rel (%p172) target = $region16
        $region15: #{tpu_custom_call.1} parent=11 // pred_region
          %176 = vsyncadd [#allocation3], 0
          %s177 = sshll.u32 %s0, 4
          %s178 = int_to_ptr.hbm [resolvable:$true] %s177
          %s179 = sshll.u32 [#allocation2], 4
          %s180 = int_to_ptr.vmem [resolvable:$true] %s179
          %185 = dma.hbm_to_vmem [thread:$0]  %s178, 512, %s180, [#allocation3], 128, 128, 8
        $region16: #{tpu_custom_call.1} parent=11 // pred_fallthru
          _
        // Predicated region
        $region17: #{tpu_custom_call.1} parent=11 // pred_check
          %p186 = pneg %p58
        $region18: #{tpu_custom_call.1} parent=11 // pred_check_branch
          %188 = sbr.rel (%p186) target = $region20
        $region19: #{tpu_custom_call.1} parent=11 // pred_region
          %190 = vsyncadd [#allocation6], 0
          %s191 = sshll.u32 %s1, 4
          %s192 = int_to_ptr.hbm [resolvable:$true] %s191
          %s193 = sshll.u32 [#allocation5], 4
          %s194 = int_to_ptr.vmem [resolvable:$true] %s193
          %199 = dma.hbm_to_vmem [thread:$0]  %s192, 512, %s194, [#allocation6], 128, 128, 8
        $region20: #{tpu_custom_call.1} parent=11 // pred_fallthru
          _
        // Predicated region
        $region21: #{tpu_custom_call.1} parent=11 // pred_check
          %p200 = pneg %p79
        $region22: #{tpu_custom_call.1} parent=11 // pred_check_branch
          %202 = sbr.rel (%p200) target = $region24
        $region23: #{tpu_custom_call.1} parent=11 // pred_region
          _
        $region24: #{tpu_custom_call.1} parent=11 // pred_fallthru
          _
      $region12: #{tpu_custom_call.1} parent=5 // pred_fallthru
        _
      %p203 = scmp.lt.s32.totalorder %s16, 2
      // Predicated region
      $region25: #{tpu_custom_call.1} parent=5 // pred_check
        %p204 = pneg %p203
      $region26: #{tpu_custom_call.1} parent=5 // pred_check_branch
        %206 = sbr.rel (%p204) target = $region28
      $region27: #{tpu_custom_call.1} parent=5 // pred_region
        // Predicated region
        $region29: #{tpu_custom_call.1} parent=27 // pred_check
          %p207 = pneg %p99
        $region30: #{tpu_custom_call.1} parent=27 // pred_check_branch
          %209 = sbr.rel (%p207) target = $region32
        $region31: #{tpu_custom_call.1} parent=27 // pred_region
          %s210 = sand.u32 %s16, 1
          %s211 = scalar_lea.sflag [#allocation3], %s210
          %s212 = sand.u32 %s89, 1
          %s213 = smul.addr %s212, 16
          %s214 = scalar_lea.vmem [#allocation7], %s213
          %216 = vsyncadd %s211, 0
          %s217 = smul.addr %s16, 2
          %s218 = smul.addr %s217, 8
          %s219 = scalar_lea.hbm %s3, %s218
          %s220 = sshll.u32 %s219, 4
          %s221 = int_to_ptr.hbm [resolvable:$true] %s220
          %s222 = sshll.u32 %s214, 4
          %s223 = int_to_ptr.vmem [resolvable:$true] %s222
          %228 = dma.hbm_to_vmem [thread:$0]  %s221, 256, %s223, %s211, 128, 128, 8
        $region32: #{tpu_custom_call.1} parent=27 // pred_fallthru
          _
        // Predicated region
        $region33: #{tpu_custom_call.1} parent=27 // pred_check
          %p229 = pneg %p125
        $region34: #{tpu_custom_call.1} parent=27 // pred_check_branch
          %231 = sbr.rel (%p229) target = $region36
        $region35: #{tpu_custom_call.1} parent=27 // pred_region
          %p232 = scmp.lt.s32.totalorder %s16, 1
          %s233 = scalar_select %p232, %s16, 1
          %s234 = scalar_lea.vmem %s4, %s233
        $region36: #{tpu_custom_call.1} parent=27 // pred_fallthru
          _
      $region28: #{tpu_custom_call.1} parent=5 // pred_fallthru
        _
      %p235 = scmp.le.s32.totalorder 1, %s16
      %p236 = scmp.lt.s32.totalorder %s16, 3
      %p237 = pnand %p235, %p236
      %p238 = pneg %p237
      // Predicated region
      $region37: #{tpu_custom_call.1} parent=5 // pred_check
        _
      $region38: #{tpu_custom_call.1} parent=5 // pred_check_branch
        %240 = sbr.rel (%p237) target = $region40
      $region39: #{tpu_custom_call.1} parent=5 // pred_region
        %s241 = ssub.s32 %s16, 1
        // Predicated region
        $region41: #{tpu_custom_call.1} parent=39 // pred_check
          %p242 = pneg %p37
        $region42: #{tpu_custom_call.1} parent=39 // pred_check_branch
          %244 = sbr.rel (%p242) target = $region44
        $region43: #{tpu_custom_call.1} parent=39 // pred_region
          %246 = dma.done [#allocation3], 512
        $region44: #{tpu_custom_call.1} parent=39 // pred_fallthru
          _
        // Predicated region
        $region45: #{tpu_custom_call.1} parent=39 // pred_check
          %p247 = pneg %p58
        $region46: #{tpu_custom_call.1} parent=39 // pred_check_branch
          %249 = sbr.rel (%p247) target = $region48
        $region47: #{tpu_custom_call.1} parent=39 // pred_region
          %251 = dma.done [#allocation6], 512
        $region48: #{tpu_custom_call.1} parent=39 // pred_fallthru
          _
        %s252 = sand.u32 %s21, 1
        %s253 = scalar_lea.sflag [#allocation3], %s252
        %s254 = sand.u32 %s92, 1
        %s255 = smul.addr %s254, 16
        %s256 = scalar_lea.vmem [#allocation7], %s255
        // Predicated region
        $region49: #{tpu_custom_call.1} parent=39 // pred_check
          %p257 = pneg %p105
        $region50: #{tpu_custom_call.1} parent=39 // pred_check_branch
          %259 = sbr.rel (%p257) target = $region52
        $region51: #{tpu_custom_call.1} parent=39 // pred_region
          %261 = dma.done %s253, 256
        $region52: #{tpu_custom_call.1} parent=39 // pred_fallthru
          _
        %p262 = pneg %p37
        %p263 = pneg %p34
        %p264 = pneg %p58
        %p265 = pneg %p55
        %p266 = pneg %p79
        %p267 = pneg %p76
        %s268 = sand.u32 %s21, 1
        %s269 = scalar_lea.sflag [#allocation3], %s268
        %s270 = sand.u32 %s92, 1
        %s271 = smul.addr %s270, 16
        %s272 = scalar_lea.vmem [#allocation7], %s271
        %p273 = pneg %p105
        %p274 = pneg %p102
        %p275 = scmp.lt.s32.totalorder %s21, 1
        %s276 = scalar_select %p275, %s21, 1
        %s277 = scalar_lea.vmem %s4, %s276
        %p278 = pneg %p131
        %p279 = pneg %p128
        %p280 = pneg %p157
        %p281 = pneg %p154
        %s282 = sand.u32 %s144, 1
        %s283 = scalar_lea.sflag [#allocation4], %s282
        %s284 = sand.u32 %s144, 1
        %s285 = smul.addr %s284, 2
        %s286 = scalar_lea.vmem [#allocation8], %s285
        %p287 = scmp.lt.s32.totalorder %s21, 1
        %s288 = scalar_select %p287, %s21, 1
        %s289 = scalar_lea.vmem %s4, %s288
        %v290 = vld [vmem:[#allocation2] sm:$0xff]
        %v291 = vld [vmem:[#allocation2 + $0x8] sm:$0xff]
        %v292 = vld [vmem:[#allocation2 + $0x10] sm:$0xff]
        %v293 = vld [vmem:[#allocation2 + $0x18] sm:$0xff]
        %v294 = vld [vmem:[#allocation5] sm:$0xff]
        %v295 = vld [vmem:[#allocation5 + $0x8] sm:$0xff]
        %v296 = vld [vmem:[#allocation5 + $0x10] sm:$0xff]
        %v297 = vld [vmem:[#allocation5 + $0x18] sm:$0xff]
        %v298 = vld [vmem:[%s2] sm:$0xff]
        %v299 = vld [vmem:[%s2 + $0x8] sm:$0xff]
        %v300 = vld [vmem:[%s256] sm:$0xff]
        %v301 = vld [vmem:[%s256 + $0x8] sm:$0xff]
        %v302 = vld [vmem:[%s289] sm:$0x1]
        %vm303 = vcmask 261120
        %v305 = vsel %vm303, %v290, 0
        %v308 = vsel %vm303, %v291, 0
        %v311 = vsel %vm303, %v292, 0
        %v314 = vsel %vm303, %v293, 0
        %v317 = vsel %vm303, %v300, 0
        %v320 = vsel %vm303, %v301, 0
        %322 = vmatpush.xpose.msra.mxu0 0.0
        %323 = vmatpush.xpose.msra.mxu0 0.0
        %324 = vmatpush.xpose.msra.mxu0 0.0
        %325 = vmatpush.xpose.msra.mxu0 0.0
        %326 = vmatpush.xpose.msra.mxu0 0.0
        %327 = vmatpush.xpose.msra.mxu0 0.0
        %328 = vmatpush.xpose.msra.mxu0 0.0
        %329 = vmatpush.xpose.msra.mxu0 0.0
        %330 = vmatpush.xpose.msra.mxu0 0.0
        %331 = vmatpush.xpose.msra.mxu0 0.0
        %332 = vmatpush.xpose.msra.mxu0 0.0
        %333 = vmatpush.xpose.msra.mxu0 0.0
        %334 = vmatpush.xpose.msra.mxu0 0.0
        %335 = vmatpush.xpose.msra.mxu0 0.0
        %336 = vmatpush.xpose.msra.mxu0 %v320
        %337 = vmatpush.xpose.msra.mxu0 %v317
        %338 = vmatmul.f32.gmra.mxu0 %v305
        %v339 = vpop.f32.mrf.mxu0
        %v340 = vadd.f32 0.0, %v339
        %341 = vmatmul.f32.gmra.mxu0 %v308
        %v342 = vpop.f32.mrf.mxu0
        %v343 = vadd.f32 0.0, %v342
        %344 = vmatmul.f32.gmra.mxu0 %v311
        %v345 = vpop.f32.mrf.mxu0
        %v346 = vadd.f32 0.0, %v345
        %347 = vmatmul.f32.gmra.mxu0 %v314
        %v348 = vpop.f32.mrf.mxu0
        %v349 = vadd.f32 0.0, %v348
        %350 = vdwg.mxu0
        %v352 = vperm.slane %v302, 0
        %v354 = vmul.f32 %v340, %v352
        %v355 = vmul.f32 %v343, %v352
        %v356 = vmul.f32 %v346, %v352
        %v357 = vmul.f32 %v349, %v352
        %v358 = vmul.f32 %v354, 0.1
        %v359 = vmul.f32 %v355, 0.1
        %v360 = vmul.f32 %v356, 0.1
        %v361 = vmul.f32 %v357, 0.1
        %v362 = vmax.f32 %v354, %v358
        %v363 = vmax.f32 %v355, %v359
        %v364 = vmax.f32 %v356, %v360
        %v365 = vmax.f32 %v357, %v361
        %v366 = vmul.f32 %v362, %v362
        %v367 = vmul.f32 %v363, %v363
        %v368 = vmul.f32 %v364, %v364
        %v369 = vmul.f32 %v365, %v365
        %vm370 = vcmask 130048
        %v372 = vsel %vm370, %v366, 0
        %v375 = vsel %vm370, %v367, 0
        %v378 = vsel %vm370, %v368, 0
        %v381 = vsel %vm370, %v369, 0
        %383 = vmatpush.msra.mxu0 0.0
        %384 = vmatpush.msra.mxu0 0.0
        %385 = vmatpush.msra.mxu0 0.0
        %386 = vmatpush.msra.mxu0 0.0
        %387 = vmatpush.msra.mxu0 0.0
        %388 = vmatpush.msra.mxu0 0.0
        %389 = vmatpush.msra.mxu0 0.0
        %390 = vmatpush.msra.mxu0 0.0
        %391 = vmatpush.msra.mxu0 0.0
        %392 = vmatpush.msra.mxu0 0.0
        %393 = vmatpush.msra.mxu0 0.0
        %394 = vmatpush.msra.mxu0 0.0
        %395 = vmatpush.msra.mxu0 0.0
        %396 = vmatpush.msra.mxu0 0.0
        %397 = vmatpush.msra.mxu0 %v299
        %398 = vmatpush.msra.mxu0 %v298
        %399 = vmatmul.f32.gmra.mxu0 %v372
        %v400 = vpop.f32.mrf.mxu0
        %v401 = vadd.f32 0.0, %v400
        %402 = vmatmul.f32.gmra.mxu0 %v375
        %v403 = vpop.f32.mrf.mxu0
        %v404 = vadd.f32 0.0, %v403
        %405 = vmatmul.f32.gmra.mxu0 %v378
        %v406 = vpop.f32.mrf.mxu0
        %v407 = vadd.f32 0.0, %v406
        %408 = vmatmul.f32.gmra.mxu0 %v381
        %v409 = vpop.f32.mrf.mxu0
        %v410 = vadd.f32 0.0, %v409
        %411 = vdwg.mxu0
        %vm412 = vcmask 15360
        %v414 = vsel %vm412, %v401, 0
        %v417 = vsel %vm412, %v404, 0
        %v420 = vsel %vm412, %v407, 0
        %v423 = vsel %vm412, %v410, 0
        %v426 = vsel %vm412, %v298, 0
        %v429 = vsel %vm412, %v299, 0
        %431 = vmatpush.xpose.msra.mxu0 0.0
        %432 = vmatpush.xpose.msra.mxu0 0.0
        %433 = vmatpush.xpose.msra.mxu0 0.0
        %434 = vmatpush.xpose.msra.mxu0 0.0
        %435 = vmatpush.xpose.msra.mxu0 0.0
        %436 = vmatpush.xpose.msra.mxu0 0.0
        %437 = vmatpush.xpose.msra.mxu0 0.0
        %438 = vmatpush.xpose.msra.mxu0 0.0
        %439 = vmatpush.xpose.msra.mxu0 0.0
        %440 = vmatpush.xpose.msra.mxu0 0.0
        %441 = vmatpush.xpose.msra.mxu0 0.0
        %442 = vmatpush.xpose.msra.mxu0 0.0
        %443 = vmatpush.xpose.msra.mxu0 0.0
        %444 = vmatpush.xpose.msra.mxu0 0.0
        %445 = vmatpush.xpose.msra.mxu0 %v429
        %446 = vmatpush.xpose.msra.mxu0 %v426
        %447 = vmatmul.f32.gmra.mxu0 %v414
        %v448 = vpop.f32.mrf.mxu0
        %v449 = vadd.f32 0.0, %v448
        %450 = vmatmul.f32.gmra.mxu0 %v417
        %v451 = vpop.f32.mrf.mxu0
        %v452 = vadd.f32 0.0, %v451
        %453 = vmatmul.f32.gmra.mxu0 %v420
        %v454 = vpop.f32.mrf.mxu0
        %v455 = vadd.f32 0.0, %v454
        %456 = vmatmul.f32.gmra.mxu0 %v423
        %v457 = vpop.f32.mrf.mxu0
        %v458 = vadd.f32 0.0, %v457
        %459 = vdwg.mxu0
        %v460 = vrsqrt.pop %v449
        %v461 = vmul.f32 %v460, %v449
        %v462 = vmul.f32 %v461, %v460
        %v463 = vmul.f32 0.5, %v462
        %v464 = vsub.f32 1.5, %v463
        %v465 = vmul.f32 %v460, %v464
        %v466 = vmul.f32 %v449, %v465
        %vm467 = vcmp.eq.f32.partialorder %v449, inf
        %v468 = vsel %vm467, %v449, %v466
        %vm469 = vcmp.eq.f32.partialorder %v449, 0.0
        %v470 = vand.u32 %v449, 2147483648
        %v471 = vsel %vm469, %v470, %v468
        %v472 = vrsqrt.pop %v452
        %v473 = vmul.f32 %v472, %v452
        %v474 = vmul.f32 %v473, %v472
        %v475 = vmul.f32 0.5, %v474
        %v476 = vsub.f32 1.5, %v475
        %v477 = vmul.f32 %v472, %v476
        %v478 = vmul.f32 %v452, %v477
        %vm479 = vcmp.eq.f32.partialorder %v452, inf
        %v480 = vsel %vm479, %v452, %v478
        %vm481 = vcmp.eq.f32.partialorder %v452, 0.0
        %v482 = vand.u32 %v452, 2147483648
        %v483 = vsel %vm481, %v482, %v480
        %v484 = vrsqrt.pop %v455
        %v485 = vmul.f32 %v484, %v455
        %v486 = vmul.f32 %v485, %v484
        %v487 = vmul.f32 0.5, %v486
        %v488 = vsub.f32 1.5, %v487
        %v489 = vmul.f32 %v484, %v488
        %v490 = vmul.f32 %v455, %v489
        %vm491 = vcmp.eq.f32.partialorder %v455, inf
        %v492 = vsel %vm491, %v455, %v490
        %vm493 = vcmp.eq.f32.partialorder %v455, 0.0
        %v494 = vand.u32 %v455, 2147483648
        %v495 = vsel %vm493, %v494, %v492
        %v496 = vrsqrt.pop %v458
        %v497 = vmul.f32 %v496, %v458
        %v498 = vmul.f32 %v497, %v496
        %v499 = vmul.f32 0.5, %v498
        %v500 = vsub.f32 1.5, %v499
        %v501 = vmul.f32 %v496, %v500
        %v502 = vmul.f32 %v458, %v501
        %vm503 = vcmp.eq.f32.partialorder %v458, inf
        %v504 = vsel %vm503, %v458, %v502
        %vm505 = vcmp.eq.f32.partialorder %v458, 0.0
        %v506 = vand.u32 %v458, 2147483648
        %v507 = vsel %vm505, %v506, %v504
        %v508 = vadd.f32 %v471, 1e-08
        %v509 = vadd.f32 %v483, 1e-08
        %v510 = vadd.f32 %v495, 1e-08
        %v511 = vadd.f32 %v507, 1e-08
        %v512 = vrcp.pop %v508
        %v513 = vmul.f32 %v508, %v512
        %v514 = vsub.f32 1.0, %v513
        %v515 = vmul.f32 %v512, %v514
        %v516 = vadd.f32 %v512, %v515
        %vm517 = vweird.f32 %v508
        %vm518 = vweird.f32 %v512
        %vm519 = vmor %vm517, %vm518
        %v520 = vsel %vm519, %v512, %v516
        %v521 = vand.u32 2147483647, %v508
        %vm522 = vcmp.eq.f32.partialorder %v521, 8.507059e+37
        %v523 = vand.u32 %v508, 2147483648
        %v524 = vor.u32 1.1754944e-38, %v523
        %v525 = vsel %vm522, %v524, %v520
        %v526 = vmul.f32 %v362, %v525
        %v527 = vrcp.pop %v509
        %v528 = vmul.f32 %v509, %v527
        %v529 = vsub.f32 1.0, %v528
        %v530 = vmul.f32 %v527, %v529
        %v531 = vadd.f32 %v527, %v530
        %vm532 = vweird.f32 %v509
        %vm533 = vweird.f32 %v527
        %vm534 = vmor %vm532, %vm533
        %v535 = vsel %vm534, %v527, %v531
        %v536 = vand.u32 2147483647, %v509
        %vm537 = vcmp.eq.f32.partialorder %v536, 8.507059e+37
        %v538 = vand.u32 %v509, 2147483648
        %v539 = vor.u32 1.1754944e-38, %v538
        %v540 = vsel %vm537, %v539, %v535
        %v541 = vmul.f32 %v363, %v540
        %v542 = vrcp.pop %v510
        %v543 = vmul.f32 %v510, %v542
        %v544 = vsub.f32 1.0, %v543
        %v545 = vmul.f32 %v542, %v544
        %v546 = vadd.f32 %v542, %v545
        %vm547 = vweird.f32 %v510
        %vm548 = vweird.f32 %v542
        %vm549 = vmor %vm547, %vm548
        %v550 = vsel %vm549, %v542, %v546
        %v551 = vand.u32 2147483647, %v510
        %vm552 = vcmp.eq.f32.partialorder %v551, 8.507059e+37
        %v553 = vand.u32 %v510, 2147483648
        %v554 = vor.u32 1.1754944e-38, %v553
        %v555 = vsel %vm552, %v554, %v550
        %v556 = vmul.f32 %v364, %v555
        %v557 = vrcp.pop %v511
        %v558 = vmul.f32 %v511, %v557
        %v559 = vsub.f32 1.0, %v558
        %v560 = vmul.f32 %v557, %v559
        %v561 = vadd.f32 %v557, %v560
        %vm562 = vweird.f32 %v511
        %vm563 = vweird.f32 %v557
        %vm564 = vmor %vm562, %vm563
        %v565 = vsel %vm564, %v557, %v561
        %v566 = vand.u32 2147483647, %v511
        %vm567 = vcmp.eq.f32.partialorder %v566, 8.507059e+37
        %v568 = vand.u32 %v511, 2147483648
        %v569 = vor.u32 1.1754944e-38, %v568
        %v570 = vsel %vm567, %v569, %v565
        %v571 = vmul.f32 %v365, %v570
        %v572 = vmul.f32 %v526, 9.0
        %v573 = vmul.f32 %v541, 9.0
        %v574 = vmul.f32 %v556, 9.0
        %v575 = vmul.f32 %v571, 9.0
        %v576 = vmul.f32 %v572, 1.442695
        %v577 = vpow.pop %v576
        %v578 = vmul.f32 %v573, 1.442695
        %v579 = vpow.pop %v578
        %v580 = vmul.f32 %v574, 1.442695
        %v581 = vpow.pop %v580
        %v582 = vmul.f32 %v575, 1.442695
        %v583 = vpow.pop %v582
        %v584 = vsel %vm370, %v577, 0.0
        %v585 = vrot.slane %v584, 4
        %v586 = vadd.f32 %v584, %v585
        %v587 = vrot.slane %v586, 2
        %v588 = vadd.f32 %v586, %v587
        %v589 = vrot.slane %v588, 1
        %v590 = vadd.f32 %v588, %v589
        %v591 = vsel %vm370, %v579, 0.0
        %v592 = vrot.slane %v591, 4
        %v593 = vadd.f32 %v591, %v592
        %v594 = vrot.slane %v593, 2
        %v595 = vadd.f32 %v593, %v594
        %v596 = vrot.slane %v595, 1
        %v597 = vadd.f32 %v595, %v596
        %v598 = vsel %vm370, %v581, 0.0
        %v599 = vrot.slane %v598, 4
        %v600 = vadd.f32 %v598, %v599
        %v601 = vrot.slane %v600, 2
        %v602 = vadd.f32 %v600, %v601
        %v603 = vrot.slane %v602, 1
        %v604 = vadd.f32 %v602, %v603
        %v605 = vsel %vm370, %v583, 0.0
        %v606 = vrot.slane %v605, 4
        %v607 = vadd.f32 %v605, %v606
        %v608 = vrot.slane %v607, 2
        %v609 = vadd.f32 %v607, %v608
        %v610 = vrot.slane %v609, 1
        %v611 = vadd.f32 %v609, %v610
        %v612 = vrcp.pop %v590
        %v613 = vmul.f32 %v590, %v612
        %v614 = vsub.f32 1.0, %v613
        %v615 = vmul.f32 %v612, %v614
        %v616 = vadd.f32 %v612, %v615
        %vm617 = vweird.f32 %v590
        %vm618 = vweird.f32 %v612
        %vm619 = vmor %vm617, %vm618
        %v620 = vsel %vm619, %v612, %v616
        %v621 = vand.u32 2147483647, %v590
        %vm622 = vcmp.eq.f32.partialorder %v621, 8.507059e+37
        %v623 = vand.u32 %v590, 2147483648
        %v624 = vor.u32 1.1754944e-38, %v623
        %v625 = vsel %vm622, %v624, %v620
        %v626 = vmul.f32 %v577, %v625
        %v627 = vrcp.pop %v597
        %v628 = vmul.f32 %v597, %v627
        %v629 = vsub.f32 1.0, %v628
        %v630 = vmul.f32 %v627, %v629
        %v631 = vadd.f32 %v627, %v630
        %vm632 = vweird.f32 %v597
        %vm633 = vweird.f32 %v627
        %vm634 = vmor %vm632, %vm633
        %v635 = vsel %vm634, %v627, %v631
        %v636 = vand.u32 2147483647, %v597
        %vm637 = vcmp.eq.f32.partialorder %v636, 8.507059e+37
        %v638 = vand.u32 %v597, 2147483648
        %v639 = vor.u32 1.1754944e-38, %v638
        %v640 = vsel %vm637, %v639, %v635
        %v641 = vmul.f32 %v579, %v640
        %v642 = vrcp.pop %v604
        %v643 = vmul.f32 %v604, %v642
        %v644 = vsub.f32 1.0, %v643
        %v645 = vmul.f32 %v642, %v644
        %v646 = vadd.f32 %v642, %v645
        %vm647 = vweird.f32 %v604
        %vm648 = vweird.f32 %v642
        %vm649 = vmor %vm647, %vm648
        %v650 = vsel %vm649, %v642, %v646
        %v651 = vand.u32 2147483647, %v604
        %vm652 = vcmp.eq.f32.partialorder %v651, 8.507059e+37
        %v653 = vand.u32 %v604, 2147483648
        %v654 = vor.u32 1.1754944e-38, %v653
        %v655 = vsel %vm652, %v654, %v650
        %v656 = vmul.f32 %v581, %v655
        %v657 = vrcp.pop %v611
        %v658 = vmul.f32 %v611, %v657
        %v659 = vsub.f32 1.0, %v658
        %v660 = vmul.f32 %v657, %v659
        %v661 = vadd.f32 %v657, %v660
        %vm662 = vweird.f32 %v611
        %vm663 = vweird.f32 %v657
        %vm664 = vmor %vm662, %vm663
        %v665 = vsel %vm664, %v657, %v661
        %v666 = vand.u32 2147483647, %v611
        %vm667 = vcmp.eq.f32.partialorder %v666, 8.507059e+37
        %v668 = vand.u32 %v611, 2147483648
        %v669 = vor.u32 1.1754944e-38, %v668
        %v670 = vsel %vm667, %v669, %v665
        %v671 = vmul.f32 %v583, %v670
        %v672 = vmul.f32 %v626, %v340
        %v673 = vmul.f32 %v641, %v343
        %v674 = vmul.f32 %v656, %v346
        %v675 = vmul.f32 %v671, %v349
        %v676 = vsel %vm370, %v672, 0.0
        %v677 = vrot.slane %v676, 4
        %v678 = vadd.f32 %v676, %v677
        %v679 = vrot.slane %v678, 2
        %v680 = vadd.f32 %v678, %v679
        %v681 = vrot.slane %v680, 1
        %v682 = vadd.f32 %v680, %v681
        %v683 = vsel %vm370, %v673, 0.0
        %v684 = vrot.slane %v683, 4
        %v685 = vadd.f32 %v683, %v684
        %v686 = vrot.slane %v685, 2
        %v687 = vadd.f32 %v685, %v686
        %v688 = vrot.slane %v687, 1
        %v689 = vadd.f32 %v687, %v688
        %v690 = vsel %vm370, %v674, 0.0
        %v691 = vrot.slane %v690, 4
        %v692 = vadd.f32 %v690, %v691
        %v693 = vrot.slane %v692, 2
        %v694 = vadd.f32 %v692, %v693
        %v695 = vrot.slane %v694, 1
        %v696 = vadd.f32 %v694, %v695
        %v697 = vsel %vm370, %v675, 0.0
        %v698 = vrot.slane %v697, 4
        %v699 = vadd.f32 %v697, %v698
        %v700 = vrot.slane %v699, 2
        %v701 = vadd.f32 %v699, %v700
        %v702 = vrot.slane %v701, 1
        %v703 = vadd.f32 %v701, %v702
        %vm704 = vcmask 64512
        %v706 = vsel %vm704, %v294, 0
        %708 = vmatpush.msra.mxu0 0.0
        %709 = vmatpush.msra.mxu0 0.0
        %710 = vmatpush.msra.mxu0 0.0
        %711 = vmatpush.msra.mxu0 0.0
        %712 = vmatpush.msra.mxu0 0.0
        %713 = vmatpush.msra.mxu0 0.0
        %714 = vmatpush.msra.mxu0 0.0
        %715 = vmatpush.msra.mxu0 0.0
        %716 = vmatpush.msra.mxu0 0.0
        %717 = vmatpush.msra.mxu0 0.0
        %718 = vmatpush.msra.mxu0 0.0
        %719 = vmatpush.msra.mxu0 0.0
        %720 = vmatpush.msra.mxu0 0.0
        %721 = vmatpush.msra.mxu0 0.0
        %722 = vmatpush.msra.mxu0 0.0
        %723 = vmatpush.msra.mxu0 %v626
        %724 = vmatmul.f32.gmra.mxu0 %v706
        %v725 = vpop.f32.mrf.mxu0
        %v726 = vadd.f32 0.0, %v725
        %727 = vdwg.mxu0
        %v729 = vsel %vm704, %v295, 0
        %731 = vmatpush.msra.mxu0 0.0
        %732 = vmatpush.msra.mxu0 0.0
        %733 = vmatpush.msra.mxu0 0.0
        %734 = vmatpush.msra.mxu0 0.0
        %735 = vmatpush.msra.mxu0 0.0
        %736 = vmatpush.msra.mxu0 0.0
        %737 = vmatpush.msra.mxu0 0.0
        %738 = vmatpush.msra.mxu0 0.0
        %739 = vmatpush.msra.mxu0 0.0
        %740 = vmatpush.msra.mxu0 0.0
        %741 = vmatpush.msra.mxu0 0.0
        %742 = vmatpush.msra.mxu0 0.0
        %743 = vmatpush.msra.mxu0 0.0
        %744 = vmatpush.msra.mxu0 0.0
        %745 = vmatpush.msra.mxu0 0.0
        %746 = vmatpush.msra.mxu0 %v641
        %747 = vmatmul.f32.gmra.mxu0 %v729
        %v748 = vpop.f32.mrf.mxu0
        %v749 = vadd.f32 0.0, %v748
        %750 = vdwg.mxu0
        %v752 = vsel %vm704, %v296, 0
        %754 = vmatpush.msra.mxu0 0.0
        %755 = vmatpush.msra.mxu0 0.0
        %756 = vmatpush.msra.mxu0 0.0
        %757 = vmatpush.msra.mxu0 0.0
        %758 = vmatpush.msra.mxu0 0.0
        %759 = vmatpush.msra.mxu0 0.0
        %760 = vmatpush.msra.mxu0 0.0
        %761 = vmatpush.msra.mxu0 0.0
        %762 = vmatpush.msra.mxu0 0.0
        %763 = vmatpush.msra.mxu0 0.0
        %764 = vmatpush.msra.mxu0 0.0
        %765 = vmatpush.msra.mxu0 0.0
        %766 = vmatpush.msra.mxu0 0.0
        %767 = vmatpush.msra.mxu0 0.0
        %768 = vmatpush.msra.mxu0 0.0
        %769 = vmatpush.msra.mxu0 %v656
        %770 = vmatmul.f32.gmra.mxu0 %v752
        %v771 = vpop.f32.mrf.mxu0
        %v772 = vadd.f32 0.0, %v771
        %773 = vdwg.mxu0
        %v775 = vsel %vm704, %v297, 0
        %777 = vmatpush.msra.mxu0 0.0
        %778 = vmatpush.msra.mxu0 0.0
        %779 = vmatpush.msra.mxu0 0.0
        %780 = vmatpush.msra.mxu0 0.0
        %781 = vmatpush.msra.mxu0 0.0
        %782 = vmatpush.msra.mxu0 0.0
        %783 = vmatpush.msra.mxu0 0.0
        %784 = vmatpush.msra.mxu0 0.0
        %785 = vmatpush.msra.mxu0 0.0
        %786 = vmatpush.msra.mxu0 0.0
        %787 = vmatpush.msra.mxu0 0.0
        %788 = vmatpush.msra.mxu0 0.0
        %789 = vmatpush.msra.mxu0 0.0
        %790 = vmatpush.msra.mxu0 0.0
        %791 = vmatpush.msra.mxu0 0.0
        %792 = vmatpush.msra.mxu0 %v671
        %793 = vmatmul.f32.gmra.mxu0 %v775
        %v794 = vpop.f32.mrf.mxu0
        %v795 = vadd.f32 0.0, %v794
        %796 = vdwg.mxu0
        %v797 = vmul.f32 %v626, %v726
        %v798 = vmul.f32 %v641, %v749
        %v799 = vmul.f32 %v656, %v772
        %v800 = vmul.f32 %v671, %v795
        %v801 = vsel %vm370, %v797, 0.0
        %v802 = vrot.slane %v801, 4
        %v803 = vadd.f32 %v801, %v802
        %v804 = vrot.slane %v803, 2
        %v805 = vadd.f32 %v803, %v804
        %v806 = vrot.slane %v805, 1
        %v807 = vadd.f32 %v805, %v806
        %v808 = vsel %vm370, %v798, 0.0
        %v809 = vrot.slane %v808, 4
        %v810 = vadd.f32 %v808, %v809
        %v811 = vrot.slane %v810, 2
        %v812 = vadd.f32 %v810, %v811
        %v813 = vrot.slane %v812, 1
        %v814 = vadd.f32 %v812, %v813
        %v815 = vsel %vm370, %v799, 0.0
        %v816 = vrot.slane %v815, 4
        %v817 = vadd.f32 %v815, %v816
        %v818 = vrot.slane %v817, 2
        %v819 = vadd.f32 %v817, %v818
        %v820 = vrot.slane %v819, 1
        %v821 = vadd.f32 %v819, %v820
        %v822 = vsel %vm370, %v800, 0.0
        %v823 = vrot.slane %v822, 4
        %v824 = vadd.f32 %v822, %v823
        %v825 = vrot.slane %v824, 2
        %v826 = vadd.f32 %v824, %v825
        %v827 = vrot.slane %v826, 1
        %v828 = vadd.f32 %v826, %v827
        %v829 = vmax.f32 %v807, 0.0
        %v830 = vmax.f32 %v814, 0.0
        %v831 = vmax.f32 %v821, 0.0
        %v832 = vmax.f32 %v828, 0.0
        %v833 = vmul.f32 %v300, %v300
        %v834 = vmul.f32 %v301, %v301
        %v835 = vsel %vm303, %v833, 0.0
        %836 = vadd.xlane.f32.xlu0 %v835
        %v837 = vpop.xlane.xlu0 %836
        %v838 = vsel %vm303, %v834, 0.0
        %839 = vadd.xlane.f32.xlu0 %v838
        %v840 = vpop.xlane.xlu0 %839
        %v841 = vrsqrt.pop %v837
        %v842 = vmul.f32 %v841, %v837
        %v843 = vmul.f32 %v842, %v841
        %v844 = vmul.f32 0.5, %v843
        %v845 = vsub.f32 1.5, %v844
        %v846 = vmul.f32 %v841, %v845
        %v847 = vmul.f32 %v837, %v846
        %vm848 = vcmp.eq.f32.partialorder %v837, inf
        %v849 = vsel %vm848, %v837, %v847
        %vm850 = vcmp.eq.f32.partialorder %v837, 0.0
        %v851 = vand.u32 %v837, 2147483648
        %v852 = vsel %vm850, %v851, %v849
        %v853 = vrsqrt.pop %v840
        %v854 = vmul.f32 %v853, %v840
        %v855 = vmul.f32 %v854, %v853
        %v856 = vmul.f32 0.5, %v855
        %v857 = vsub.f32 1.5, %v856
        %v858 = vmul.f32 %v853, %v857
        %v859 = vmul.f32 %v840, %v858
        %vm860 = vcmp.eq.f32.partialorder %v840, inf
        %v861 = vsel %vm860, %v840, %v859
        %vm862 = vcmp.eq.f32.partialorder %v840, 0.0
        %v863 = vand.u32 %v840, 2147483648
        %v864 = vsel %vm862, %v863, %v861
        %v865 = vrsqrt.pop %v829
        %v866 = vmul.f32 %v865, %v829
        %v867 = vmul.f32 %v866, %v865
        %v868 = vmul.f32 0.5, %v867
        %v869 = vsub.f32 1.5, %v868
        %v870 = vmul.f32 %v865, %v869
        %v871 = vmul.f32 %v829, %v870
        %vm872 = vcmp.eq.f32.partialorder %v829, inf
        %v873 = vsel %vm872, %v829, %v871
        %vm874 = vcmp.eq.f32.partialorder %v829, 0.0
        %v875 = vand.u32 %v829, 2147483648
        %v876 = vsel %vm874, %v875, %v873
        %v877 = vrsqrt.pop %v830
        %v878 = vmul.f32 %v877, %v830
        %v879 = vmul.f32 %v878, %v877
        %v880 = vmul.f32 0.5, %v879
        %v881 = vsub.f32 1.5, %v880
        %v882 = vmul.f32 %v877, %v881
        %v883 = vmul.f32 %v830, %v882
        %vm884 = vcmp.eq.f32.partialorder %v830, inf
        %v885 = vsel %vm884, %v830, %v883
        %vm886 = vcmp.eq.f32.partialorder %v830, 0.0
        %v887 = vand.u32 %v830, 2147483648
        %v888 = vsel %vm886, %v887, %v885
        %v889 = vrsqrt.pop %v831
        %v890 = vmul.f32 %v889, %v831
        %v891 = vmul.f32 %v890, %v889
        %v892 = vmul.f32 0.5, %v891
        %v893 = vsub.f32 1.5, %v892
        %v894 = vmul.f32 %v889, %v893
        %v895 = vmul.f32 %v831, %v894
        %vm896 = vcmp.eq.f32.partialorder %v831, inf
        %v897 = vsel %vm896, %v831, %v895
        %vm898 = vcmp.eq.f32.partialorder %v831, 0.0
        %v899 = vand.u32 %v831, 2147483648
        %v900 = vsel %vm898, %v899, %v897
        %v901 = vrsqrt.pop %v832
        %v902 = vmul.f32 %v901, %v832
        %v903 = vmul.f32 %v902, %v901
        %v904 = vmul.f32 0.5, %v903
        %v905 = vsub.f32 1.5, %v904
        %v906 = vmul.f32 %v901, %v905
        %v907 = vmul.f32 %v832, %v906
        %vm908 = vcmp.eq.f32.partialorder %v832, inf
        %v909 = vsel %vm908, %v832, %v907
        %vm910 = vcmp.eq.f32.partialorder %v832, 0.0
        %v911 = vand.u32 %v832, 2147483648
        %v912 = vsel %vm910, %v911, %v909
        %v917 = vlaneseq
        %v918 = vshrl.u32 %v917, 7
        %920 = vset.pattern.permute.xlu0 %v918
        %921 = vperm.xlu0 %920, %v876
        %v922 = vpop.permute.xlu0 %921
        %v923 = vlaneseq
        %v924 = vshrl.u32 %v923, 7
        %v925 = vadd.s32 %v924, 8
        %926 = vset.pattern.permute.xlu0 %v925
        %927 = vperm.xlu0 %926, %v876
        %v928 = vpop.permute.xlu0 %927
        %v929 = vlaneseq
        %v930 = vshrl.u32 %v929, 7
        %932 = vset.pattern.permute.xlu0 %v930
        %933 = vperm.xlu0 %932, %v888
        %v934 = vpop.permute.xlu0 %933
        %v935 = vlaneseq
        %v936 = vshrl.u32 %v935, 7
        %v937 = vadd.s32 %v936, 8
        %938 = vset.pattern.permute.xlu0 %v937
        %939 = vperm.xlu0 %938, %v888
        %v940 = vpop.permute.xlu0 %939
        %v941 = vlaneseq
        %v942 = vshrl.u32 %v941, 7
        %944 = vset.pattern.permute.xlu0 %v942
        %945 = vperm.xlu0 %944, %v900
        %v946 = vpop.permute.xlu0 %945
        %v947 = vlaneseq
        %v948 = vshrl.u32 %v947, 7
        %v949 = vadd.s32 %v948, 8
        %950 = vset.pattern.permute.xlu0 %v949
        %951 = vperm.xlu0 %950, %v900
        %v952 = vpop.permute.xlu0 %951
        %v953 = vlaneseq
        %v954 = vshrl.u32 %v953, 7
        %956 = vset.pattern.permute.xlu0 %v954
        %957 = vperm.xlu0 %956, %v912
        %v958 = vpop.permute.xlu0 %957
        %v959 = vlaneseq
        %v960 = vshrl.u32 %v959, 7
        %v961 = vadd.s32 %v960, 8
        %962 = vset.pattern.permute.xlu0 %v961
        %963 = vperm.xlu0 %962, %v912
        %v964 = vpop.permute.xlu0 %963
        %v973 = vmul.f32 %v852, %v922
        %v974 = vmul.f32 %v864, %v928
        %v975 = vmul.f32 %v852, %v934
        %v976 = vmul.f32 %v864, %v940
        %v977 = vmul.f32 %v852, %v946
        %v978 = vmul.f32 %v864, %v952
        %v979 = vmul.f32 %v852, %v958
        %v980 = vmul.f32 %v864, %v964
        %v981 = vmax.f32 %v973, 1e-08
        %v982 = vmax.f32 %v974, 1e-08
        %v983 = vmax.f32 %v975, 1e-08
        %v984 = vmax.f32 %v976, 1e-08
        %v985 = vmax.f32 %v977, 1e-08
        %v986 = vmax.f32 %v978, 1e-08
        %v987 = vmax.f32 %v979, 1e-08
        %v988 = vmax.f32 %v980, 1e-08
        %997 = vset.pattern.permute.xlu0 0
        %998 = vperm.xlu0 %997, %v981
        %v999 = vpop.permute.xlu0 %998
        %1000 = vset.pattern.permute.xlu0 0
        %1001 = vperm.xlu0 %1000, %v982
        %v1002 = vpop.permute.xlu0 %1001
        %1003 = vset.pattern.permute.xlu0 0
        %1004 = vperm.xlu0 %1003, %v983
        %v1005 = vpop.permute.xlu0 %1004
        %1006 = vset.pattern.permute.xlu0 0
        %1007 = vperm.xlu0 %1006, %v984
        %v1008 = vpop.permute.xlu0 %1007
        %1009 = vset.pattern.permute.xlu0 0
        %1010 = vperm.xlu0 %1009, %v985
        %v1011 = vpop.permute.xlu0 %1010
        %1012 = vset.pattern.permute.xlu0 0
        %1013 = vperm.xlu0 %1012, %v986
        %v1014 = vpop.permute.xlu0 %1013
        %1015 = vset.pattern.permute.xlu0 0
        %1016 = vperm.xlu0 %1015, %v987
        %v1017 = vpop.permute.xlu0 %1016
        %1018 = vset.pattern.permute.xlu0 0
        %1019 = vperm.xlu0 %1018, %v988
        %v1020 = vpop.permute.xlu0 %1019
        %v1021 = vlaneseq
        %v1022 = vand.u32 %v1021, 127
        %v1023 = vperm.slane %v999, %v1022
        %v1024 = vadd.s32 %v1022, 4294967288
        %v1025 = vperm.slane %v1002, %v1024
        %vm1026 = vcmask 130112
        %v1027 = vsel %vm1026, %v1025, %v1023
        %v1028 = vperm.slane %v1005, %v1022
        %v1029 = vperm.slane %v1008, %v1024
        %v1030 = vsel %vm1026, %v1029, %v1028
        %v1031 = vperm.slane %v1011, %v1022
        %v1032 = vperm.slane %v1014, %v1024
        %v1033 = vsel %vm1026, %v1032, %v1031
        %v1034 = vperm.slane %v1017, %v1022
        %v1035 = vperm.slane %v1020, %v1024
        %v1036 = vsel %vm1026, %v1035, %v1034
        %v1041 = vrcp.pop %v1027
        %v1042 = vmul.f32 %v1027, %v1041
        %v1043 = vsub.f32 1.0, %v1042
        %v1044 = vmul.f32 %v1041, %v1043
        %v1045 = vadd.f32 %v1041, %v1044
        %vm1046 = vweird.f32 %v1027
        %vm1047 = vweird.f32 %v1041
        %vm1048 = vmor %vm1046, %vm1047
        %v1049 = vsel %vm1048, %v1041, %v1045
        %v1050 = vand.u32 2147483647, %v1027
        %vm1051 = vcmp.eq.f32.partialorder %v1050, 8.507059e+37
        %v1052 = vand.u32 %v1027, 2147483648
        %v1053 = vor.u32 1.1754944e-38, %v1052
        %v1054 = vsel %vm1051, %v1053, %v1049
        %v1055 = vmul.f32 %v682, %v1054
        %v1056 = vrcp.pop %v1030
        %v1057 = vmul.f32 %v1030, %v1056
        %v1058 = vsub.f32 1.0, %v1057
        %v1059 = vmul.f32 %v1056, %v1058
        %v1060 = vadd.f32 %v1056, %v1059
        %vm1061 = vweird.f32 %v1030
        %vm1062 = vweird.f32 %v1056
        %vm1063 = vmor %vm1061, %vm1062
        %v1064 = vsel %vm1063, %v1056, %v1060
        %v1065 = vand.u32 2147483647, %v1030
        %vm1066 = vcmp.eq.f32.partialorder %v1065, 8.507059e+37
        %v1067 = vand.u32 %v1030, 2147483648
        %v1068 = vor.u32 1.1754944e-38, %v1067
        %v1069 = vsel %vm1066, %v1068, %v1064
        %v1070 = vmul.f32 %v689, %v1069
        %v1071 = vrcp.pop %v1033
        %v1072 = vmul.f32 %v1033, %v1071
        %v1073 = vsub.f32 1.0, %v1072
        %v1074 = vmul.f32 %v1071, %v1073
        %v1075 = vadd.f32 %v1071, %v1074
        %vm1076 = vweird.f32 %v1033
        %vm1077 = vweird.f32 %v1071
        %vm1078 = vmor %vm1076, %vm1077
        %v1079 = vsel %vm1078, %v1071, %v1075
        %v1080 = vand.u32 2147483647, %v1033
        %vm1081 = vcmp.eq.f32.partialorder %v1080, 8.507059e+37
        %v1082 = vand.u32 %v1033, 2147483648
        %v1083 = vor.u32 1.1754944e-38, %v1082
        %v1084 = vsel %vm1081, %v1083, %v1079
        %v1085 = vmul.f32 %v696, %v1084
        %v1086 = vrcp.pop %v1036
        %v1087 = vmul.f32 %v1036, %v1086
        %v1088 = vsub.f32 1.0, %v1087
        %v1089 = vmul.f32 %v1086, %v1088
        %v1090 = vadd.f32 %v1086, %v1089
        %vm1091 = vweird.f32 %v1036
        %vm1092 = vweird.f32 %v1086
        %vm1093 = vmor %vm1091, %vm1092
        %v1094 = vsel %vm1093, %v1086, %v1090
        %v1095 = vand.u32 2147483647, %v1036
        %vm1096 = vcmp.eq.f32.partialorder %v1095, 8.507059e+37
        %v1097 = vand.u32 %v1036, 2147483648
        %v1098 = vor.u32 1.1754944e-38, %v1097
        %v1099 = vsel %vm1096, %v1098, %v1094
        %v1100 = vmul.f32 %v703, %v1099
        %v1101 = vmul.f32 %v1055, 6.0
        %v1102 = vmul.f32 %v1070, 6.0
        %v1103 = vmul.f32 %v1085, 6.0
        %v1104 = vmul.f32 %v1100, 6.0
        %v1105 = vmul.f32 %v1101, 1.442695
        %v1106 = vpow.pop %v1105
        %v1107 = vmul.f32 %v1102, 1.442695
        %v1108 = vpow.pop %v1107
        %v1109 = vmul.f32 %v1103, 1.442695
        %v1110 = vpow.pop %v1109
        %v1111 = vmul.f32 %v1104, 1.442695
        %v1112 = vpow.pop %v1111
        %v1113 = vmul.f32 %v1106, %v352
        %v1114 = vmul.f32 %v1108, %v352
        %v1115 = vmul.f32 %v1110, %v352
        %v1116 = vmul.f32 %v1112, %v352
        %1117 = vxpose.xlu0.b32.start [1/16] %v298, 128
        %1118 = vxpose.xlu0.b32.cont [2/16] %v299, 128
        %1119 = vxpose.xlu0.b32.cont [3/16] 0.0, 128
        %1120 = vxpose.xlu0.b32.cont [4/16] 0.0, 128
        %1121 = vxpose.xlu0.b32.cont [5/16] 0.0, 128
        %1122 = vxpose.xlu0.b32.cont [6/16] 0.0, 128
        %1123 = vxpose.xlu0.b32.cont [7/16] 0.0, 128
        %1124 = vxpose.xlu0.b32.cont [8/16] 0.0, 128
        %1125 = vxpose.xlu0.b32.cont [9/16] 0.0, 128
        %1126 = vxpose.xlu0.b32.cont [10/16] 0.0, 128
        %1127 = vxpose.xlu0.b32.cont [11/16] 0.0, 128
        %1128 = vxpose.xlu0.b32.cont [12/16] 0.0, 128
        %1129 = vxpose.xlu0.b32.cont [13/16] 0.0, 128
        %1130 = vxpose.xlu0.b32.cont [14/16] 0.0, 128
        %1131 = vxpose.xlu0.b32.cont [15/16] 0.0, 128
        %1132 = vxpose.xlu0.b32.end [16/16] 0.0, 128
        %v1133 = vpop.trf.xlu0
        %v1134 = vpop.trf.xlu0
        %v1135 = vpop.trf.xlu0
        %v1136 = vpop.trf.xlu0
        %v1137 = vpop.trf.xlu0
        %v1138 = vpop.trf.xlu0
        %v1139 = vpop.trf.xlu0
        %v1140 = vpop.trf.xlu0
        %v1141 = vpop.trf.xlu0
        %v1142 = vpop.trf.xlu0
        %v1143 = vpop.trf.xlu0
        %v1144 = vpop.trf.xlu0
        %v1145 = vpop.trf.xlu0
        %v1146 = vpop.trf.xlu0
        %v1147 = vpop.trf.xlu0
        %v1148 = vpop.trf.xlu0
        %v1153 = vrot.slane %v1114, 7
        %vm1154 = vcmask 1041409
        %v1155 = vsel %vm1154, %v1153, %v1113
        %v1156 = vrot.slane %v1115, 6
        %vm1157 = vcmask 1042434
        %v1158 = vsel %vm1157, %v1156, %v1155
        %v1159 = vrot.slane %v1116, 5
        %vm1160 = vcmask 1043459
        %v1161 = vsel %vm1160, %v1159, %v1158
        %v1163 = vsel %vm370, %v1133, 0
        %v1165 = vsel %vm370, %v1161, 0
        %1167 = vmatpush.xpose.msra.mxu0 0.0
        %1168 = vmatpush.xpose.msra.mxu0 0.0
        %1169 = vmatpush.xpose.msra.mxu0 0.0
        %1170 = vmatpush.xpose.msra.mxu0 0.0
        %1171 = vmatpush.xpose.msra.mxu0 0.0
        %1172 = vmatpush.xpose.msra.mxu0 0.0
        %1173 = vmatpush.xpose.msra.mxu0 0.0
        %1174 = vmatpush.xpose.msra.mxu0 0.0
        %1175 = vmatpush.xpose.msra.mxu0 0.0
        %1176 = vmatpush.xpose.msra.mxu0 0.0
        %1177 = vmatpush.xpose.msra.mxu0 0.0
        %1178 = vmatpush.xpose.msra.mxu0 0.0
        %1179 = vmatpush.xpose.msra.mxu0 0.0
        %1180 = vmatpush.xpose.msra.mxu0 0.0
        %1181 = vmatpush.xpose.msra.mxu0 0.0
        %1182 = vmatpush.xpose.msra.mxu0 %v1165
        %1183 = vmatmul.f32.gmra.mxu0 %v1163
        %v1184 = vpop.f32.mrf.mxu0
        %v1185 = vadd.f32 0.0, %v1184
        %1186 = vdwg.mxu0
        %v1187 = vmax.f32 %v1185, 1e-30
        %v1188 = vlog2.pop %v1187
        %v1189 = vmul.f32 %v1188, 0.6931472
        %v1190 = vmul.f32 %v1189, 0.16666667
        %vm1191 = vcmask 25600
        %1192 = vst.msk [vmem:[%s286] sm:$0x3] %vm1191, %v1190
        %s1193 = sand.u32 %s144, 1
        %s1194 = scalar_lea.sflag [#allocation4], %s1193
        %s1195 = sand.u32 %s144, 1
        %s1196 = smul.addr %s1195, 2
        %s1197 = scalar_lea.vmem [#allocation8], %s1196
        // Predicated region
        $region53: #{tpu_custom_call.1} parent=39 // pred_check
          %p1198 = pneg %p154
        $region54: #{tpu_custom_call.1} parent=39 // pred_check_branch
          %1200 = sbr.rel (%p1198) target = $region56
        $region55: #{tpu_custom_call.1} parent=39 // pred_region
          %1202 = vsyncadd %s1194, 0
          %s1203 = smul.addr %s21, 2
          %s1204 = scalar_lea.hbm %s5, %s1203
          %s1206 = sshll.u32 %s1197, 4
          %s1207 = int_to_ptr.vmem [resolvable:$true] %s1206
          %s1208 = sshll.u32 %s1204, 4
          %s1209 = int_to_ptr.hbm [resolvable:$true] %s1208
          %1211 = dma.vmem_to_hbm [thread:$0]  %s1207, 32, %s1209, %s1194
        $region56: #{tpu_custom_call.1} parent=39 // pred_fallthru
          _
      $region40: #{tpu_custom_call.1} parent=5 // pred_fallthru
        _
      %p1212 = scmp.le.s32.totalorder 2, %s16
      // Predicated region
      $region57: #{tpu_custom_call.1} parent=5 // pred_check
        %p1213 = pneg %p1212
      $region58: #{tpu_custom_call.1} parent=5 // pred_check_branch
        %1215 = sbr.rel (%p1213) target = $region60
      $region59: #{tpu_custom_call.1} parent=5 // pred_region
        %s1216 = ssub.s32 %s16, 2
        // Predicated region
        $region61: #{tpu_custom_call.1} parent=59 // pred_check
          %p1217 = pneg %p160
        $region62: #{tpu_custom_call.1} parent=59 // pred_check_branch
          %1219 = sbr.rel (%p1217) target = $region64
        $region63: #{tpu_custom_call.1} parent=59 // pred_region
          %s1220 = sand.u32 %s145, 1
          %s1221 = scalar_lea.sflag [#allocation4], %s1220
          %s1222 = sand.u32 %s145, 1
          %s1223 = smul.addr %s1222, 2
          %s1224 = scalar_lea.vmem [#allocation8], %s1223
          %1226 = dma.done %s1221, 32
        $region64: #{tpu_custom_call.1} parent=59 // pred_fallthru
          _
      $region60: #{tpu_custom_call.1} parent=5 // pred_fallthru
        _
    $region6: #{tpu_custom_call.1} parent=1 // loop_footer
      %s20 = sadd.s32 1, %s16
    $region7: #{tpu_custom_call.1} parent=1 // loop_footer_branch
      %15 = sbr.rel target = $region3
    $region8: #{tpu_custom_call.1} parent=1 // loop_exit
      _
    %1227 = vsyncpa [#allocation3], 1
    %s1228 = scalar_lea.sflag [#allocation3], 1
    %1229 = vsyncpa %s1228, 1
    %1230 = vsyncpa [#allocation6], 1
    %1231 = vsyncpa [#allocation4], 1
    %s1232 = scalar_lea.sflag [#allocation4], 1
    %1233 = vsyncpa %s1232, 1

</llo_original>
